<compile_context>
chip_gen: v6e
topology: v6e:2x2x1
jax: 0.10.0
libtpu: 0.0.40
codegen_flags: <defaults>
</compile_context>

<pallas_src>
import functools

import jax
import jax.numpy as jnp
from jax import lax
from jax.experimental import pallas as pl
from jax.experimental.pallas import tpu as pltpu


def _round_up(x, m):
    return ((x + m - 1) // m) * m


def _rpn_kernel(x_ref, w1_ref, b1_ref, wh_ref, bh_ref, out_ref,
                *, TH, Wp, Cin, pre_im2col):
    """One row-strip of conv3x3 (as im2col matmul) + ReLU + fused 1x1 heads.

    x_ref (pre_im2col=True):  (TH*Wp, Kpad)      bf16 pre-built im2col slab
    x_ref (pre_im2col=False): (TH+2, Wp+2, Cin)  bf16 padded feature strip
    w1_ref: (K|Kpad, Cmid) bf16    b1_ref: (1, Cmid) f32
    wh_ref: (Cmid, Npad)  bf16     bh_ref: (1, Npad) f32
    out_ref: (TH*Wp, Npad) f32
    """
    if pre_im2col:
        slab = x_ref[...]
    else:
        # im2col from the halo strip: 9 shifted windows -> one K = 9*Cin matmul.
        taps = []
        for ky in range(3):
            for kx in range(3):
                taps.append(x_ref[ky:ky + TH, kx:kx + Wp, :])
        slab = jnp.concatenate(taps, axis=-1).reshape(TH * Wp, 9 * Cin)

    acc = jnp.dot(slab, w1_ref[...], preferred_element_type=jnp.float32)
    rpn = jnp.maximum(acc + b1_ref[...], 0.0).astype(jnp.bfloat16)   # ReLU
    out = jnp.dot(rpn, wh_ref[...], preferred_element_type=jnp.float32)
    out_ref[...] = (out + bh_ref[...]).astype(out_ref.dtype)


def _pick_row_tile(H, Wp, B, row_budget=256):
    """Largest divisor TH of H with TH*Wp <= row_budget output rows per strip.

    256 rows feeds the 256-wide MXU of v6e/v7x and is still fine for v5e's
    128-wide MXU.  When B == 1 we additionally force >= 2 strips (if H allows)
    so both v7x TensorCores get a 'parallel' grid step.
    """
    max_th = H if B > 1 else max(H // 2, 1)
    best = 1
    for d in range(1, max_th + 1):
        if H % d == 0 and d * Wp <= row_budget:
            best = d
    return best


def _vmem_resident_spec():
    # Grid-invariant operand: whole array staged once in VMEM (no per-step
    # double-buffering of the weights / biases).
    return pl.BlockSpec(memory_space=pltpu.MemorySpace.VMEM)


def rpn_forward(x_nchw, params):
    """Inference forward pass of RegionProposalNetwork.

    Args:
      x_nchw: (B, Cin, H, W) float32 resnet features (PyTorch layout).
      params: dict with w1 (3,3,Cin,Cmid), b1 (Cmid,), wc (Cmid, A*2),
              bc (A*2,), wb (Cmid, A*4), bb (A*4,).

    Returns:
      anchor_cls_score: (B, H*W*A, 2)
      anchor_bboxdelta: (B, H*W*A, 4)
    """
    B, Cin, H, W = x_nchw.shape
    w1 = params["w1"]
    Cmid = w1.shape[-1]
    A2 = params["wc"].shape[-1]
    A4 = params["wb"].shape[-1]
    num_anchors = A2 // 2
    Nh = A2 + A4
    Npad = _round_up(Nh, 128)          # lane-dense fused head width
    Wp = _round_up(W, 8)               # 8-aligned output width (layout-cheap)
    K = 9 * Cin
    pre_im2col = K < 128               # small-Cin: avoid the sparse-lane regime

    # NCHW -> NHWC bf16; pad 1 px for the SAME conv plus right-pad W -> Wp.
    x = jnp.transpose(x_nchw, (0, 2, 3, 1)).astype(jnp.bfloat16)
    x_pad = jnp.pad(x, ((0, 0), (1, 1), (1, Wp - W + 1), (0, 0)))

    # Row-strip tiling of H.
    TH = _pick_row_tile(H, Wp, B)
    n_strips = H // TH
    rows = TH * Wp

    # Heads fused + zero-padded to Npad lanes; biases in f32.
    whead = jnp.concatenate([params["wc"], params["wb"]], axis=1)
    whead = jnp.pad(whead, ((0, 0), (0, Npad - Nh))).astype(jnp.bfloat16)
    bhead = jnp.concatenate([params["bc"], params["bb"]])
    bhead = jnp.pad(bhead, (0, Npad - Nh)).reshape(1, Npad).astype(jnp.float32)
    b1 = params["b1"].reshape(1, Cmid).astype(jnp.float32)
    w1col = w1.reshape(K, Cmid)

    if pre_im2col:
        # Wrapper-side lane-dense im2col (zero-padded K -> Kpad).
        Kpad = _round_up(K, 128)
        taps = [x_pad[:, ky:ky + H, kx:kx + Wp, :]
                for ky in range(3) for kx in range(3)]
        x_col = jnp.concatenate(taps, axis=-1)                    # (B,H,Wp,K)
        x_col = jnp.pad(x_col, ((0, 0), (0, 0), (0, 0), (0, Kpad - K)))
        x_in = x_col.reshape(B, H * Wp, Kpad)
        w1k = jnp.pad(w1col, ((0, Kpad - K), (0, 0))).astype(jnp.bfloat16)
        x_spec = pl.BlockSpec((None, rows, Kpad), lambda b, j: (b, j, 0))
    else:
        # Overlapping halo strips so a plain Blocked index_map pipelines them.
        strips = [x_pad[:, j * TH:j * TH + TH + 2] for j in range(n_strips)]
        x_in = jnp.stack(strips, axis=1).reshape(
            B * n_strips, TH + 2, Wp + 2, Cin)
        w1k = w1col.astype(jnp.bfloat16)
        ns = n_strips
        x_spec = pl.BlockSpec((None, TH + 2, Wp + 2, Cin),
                              lambda b, j: (b * ns + j, 0, 0, 0))

    # VMEM budget: strip working set, clamped to 90% of the chip's capacity.
    try:
        vmem_cap = int(pltpu.get_tpu_info().vmem_capacity_bytes)
    except Exception:
        vmem_cap = 64 * 1024 * 1024    # v7x is the smallest generation
    kdim = w1k.shape[0]
    blk_in = int(x_in.size) // (B * n_strips) * 2        # bf16, per block
    blk_out = rows * Npad * 4
    bytes_w = (kdim * Cmid + Cmid * Npad) * 2 + (Cmid + Npad) * 4
    bytes_tmp = rows * (kdim * 4 + Cmid * 6 + Npad * 8)  # slab/acc/rpn/out temps
    need = 2 * blk_in + 2 * blk_out + bytes_w + bytes_tmp
    vmem_limit = int(min(max(2 * need, 32 * 1024 * 1024), int(0.9 * vmem_cap)))

    kernel = functools.partial(_rpn_kernel, TH=TH, Wp=Wp, Cin=Cin,
                               pre_im2col=pre_im2col)

    out = pl.pallas_call(
        kernel,
        out_shape=jax.ShapeDtypeStruct((B, H * Wp, Npad), jnp.float32),
        grid_spec=pltpu.PrefetchScalarGridSpec(
            num_scalar_prefetch=0,
            grid=(B, n_strips),
            in_specs=[
                x_spec,
                _vmem_resident_spec(),   # w1k
                _vmem_resident_spec(),   # b1
                _vmem_resident_spec(),   # whead
                _vmem_resident_spec(),   # bhead
            ],
            out_specs=pl.BlockSpec((None, rows, Npad), lambda b, j: (b, j, 0)),
        ),
        compiler_params=pltpu.CompilerParams(
            dimension_semantics=("parallel", "parallel"),
            vmem_limit_bytes=vmem_limit),
    )(x_in, w1k, b1, whead, bhead)

    # Drop W padding and head padding; matches PyTorch permute+view ordering.
    out = out.reshape(B, H, Wp, Npad)[:, :, :W, :Nh]
    anchor_cls_score = out[..., :A2].reshape(B, H * W * num_anchors, 2)
    anchor_bboxdelta = out[..., A2:].reshape(B, H * W * num_anchors, 4)
    return anchor_cls_score, anchor_bboxdelta


def rpn_forward_reference_bf16(x_nchw, params):
    """Pure-JAX reference with the same bf16-operand / f32-accumulate casts."""
    x = jnp.transpose(x_nchw, (0, 2, 3, 1)).astype(jnp.bfloat16)
    B, H, W, Cin = x.shape
    A2 = params["wc"].shape[-1]
    num_anchors = A2 // 2

    rpn = lax.conv_general_dilated(
        x, params["w1"].astype(jnp.bfloat16), window_strides=(1, 1),
        padding="SAME", dimension_numbers=("NHWC", "HWIO", "NHWC"),
        preferred_element_type=jnp.float32)
    rpn = jnp.maximum(rpn + params["b1"].astype(jnp.float32), 0.0)
    rpn = rpn.astype(jnp.bfloat16)

    cls = jnp.einsum("bhwc,cn->bhwn", rpn, params["wc"].astype(jnp.bfloat16),
                     preferred_element_type=jnp.float32) + params["bc"]
    box = jnp.einsum("bhwc,cn->bhwn", rpn, params["wb"].astype(jnp.bfloat16),
                     preferred_element_type=jnp.float32) + params["bb"]
    return (cls.reshape(B, H * W * num_anchors, 2),
            box.reshape(B, H * W * num_anchors, 4))


def rpn_forward_reference_f32(x_nchw, params):
    """Pure-f32 reference (original module math)."""
    x = jnp.transpose(x_nchw, (0, 2, 3, 1))
    B, H, W, Cin = x.shape
    A2 = params["wc"].shape[-1]
    num_anchors = A2 // 2
    rpn = lax.conv_general_dilated(
        x, params["w1"], window_strides=(1, 1), padding="SAME",
        dimension_numbers=("NHWC", "HWIO", "NHWC"))
    rpn = jnp.maximum(rpn + params["b1"], 0.0)
    cls = jnp.einsum("bhwc,cn->bhwn", rpn, params["wc"]) + params["bc"]
    box = jnp.einsum("bhwc,cn->bhwn", rpn, params["wb"]) + params["bb"]
    return (cls.reshape(B, H * W * num_anchors, 2),
            box.reshape(B, H * W * num_anchors, 4))


def init_params(key, num_features_out, num_anchors, cmid=512):
    ks = jax.random.split(key, 6)
    scale1 = 1.0 / jnp.sqrt(num_features_out * 9.0)
    scale2 = 1.0 / jnp.sqrt(float(cmid))
    return {
        "w1": (jax.random.normal(ks[0], (3, 3, num_features_out, cmid),
                                 jnp.float32) * scale1),
        "b1": (jax.random.normal(ks[1], (cmid,), jnp.float32) * 0.01),
        "wc": (jax.random.normal(ks[2], (cmid, num_anchors * 2),
                                 jnp.float32) * scale2),
        "bc": (jax.random.normal(ks[3], (num_anchors * 2,), jnp.float32) * 0.01),
        "wb": (jax.random.normal(ks[4], (cmid, num_anchors * 4),
                                 jnp.float32) * scale2),
        "bb": (jax.random.normal(ks[5], (num_anchors * 4,), jnp.float32) * 0.01),
    }


if __name__ == "__main__":
    key = jax.random.PRNGKey(0)
    k1, k2, k3, k4 = jax.random.split(key, 4)

    fwd = jax.jit(rpn_forward)

    # Config 1: module defaults (num_features_out=4, 3 ratios x 3 sizes = 9
    # anchors) -> small-Cin path (wrapper-side lane-padded im2col).
    B, Cin, H, W = 2, 4, 16, 16
    num_anchors = 9
    x = jax.random.normal(k1, (B, Cin, H, W), jnp.float32)
    params = init_params(k2, Cin, num_anchors)
    cls, box = fwd(x, params)
    jax.block_until_ready((cls, box))
    assert cls.shape == (B, H * W * num_anchors, 2)
    assert box.shape == (B, H * W * num_anchors, 4)

    cls_rb, box_rb = rpn_forward_reference_bf16(x, params)
    assert jnp.allclose(cls, cls_rb, atol=2e-2, rtol=2e-2)
    assert jnp.allclose(box, box_rb, atol=2e-2, rtol=2e-2)
    cls_rf, box_rf = rpn_forward_reference_f32(x, params)
    assert jnp.allclose(cls, cls_rf, atol=1e-1, rtol=1e-1)
    assert jnp.allclose(box, box_rf, atol=1e-1, rtol=1e-1)

    # Config 2: wider channels, batch 1 -> in-kernel halo-strip im2col path
    # (2 row strips; exercises the realistic-backbone code path).
    B2, Cin2, H2, W2 = 1, 32, 16, 16
    x2 = jax.random.normal(k3, (B2, Cin2, H2, W2), jnp.float32)
    params2 = init_params(k4, Cin2, num_anchors, cmid=256)
    cls2, box2 = fwd(x2, params2)
    jax.block_until_ready((cls2, box2))
    assert cls2.shape == (B2, H2 * W2 * num_anchors, 2)
    assert box2.shape == (B2, H2 * W2 * num_anchors, 4)
    cls2_rb, box2_rb = rpn_forward_reference_bf16(x2, params2)
    assert jnp.allclose(cls2, cls2_rb, atol=2e-2, rtol=2e-2)
    assert jnp.allclose(box2, box2_rb, atol=2e-2, rtol=2e-2)

    print("KERNEL_OK")
</pallas_src>

<mosaic_0001>
module attributes {stable_mosaic.version = 11 : i64} {
  func.func @_rpn_kernel(%arg0: i32, %arg1: i32, %arg2: memref<1x256x128xbf16, #tpu.memory_space<vmem>>, %arg3: memref<128x512xbf16, #tpu.memory_space<vmem>>, %arg4: memref<1x512xf32, #tpu.memory_space<vmem>>, %arg5: memref<512x128xbf16, #tpu.memory_space<vmem>>, %arg6: memref<1x128xf32, #tpu.memory_space<vmem>>, %arg7: memref<1x256x128xf32, #tpu.memory_space<vmem>>) attributes {dimension_semantics = [#tpu.dimension_semantics<parallel>, #tpu.dimension_semantics<parallel>], iteration_bounds = array<i64: 2, 1>, scalar_prefetch = 0 : i64, scratch_operands = 0 : i64, tpu.core_type = #tpu.core_type<tc>, window_params = [{transform_indices = @transform_0, window_bounds = array<i64: 1, 256, 128>}, {pipeline_mode = #tpu.pipeline_mode<synchronous>, transform_indices = @transform_1, window_bounds = array<i64: 128, 512>}, {pipeline_mode = #tpu.pipeline_mode<synchronous>, transform_indices = @transform_2, window_bounds = array<i64: 1, 512>}, {pipeline_mode = #tpu.pipeline_mode<synchronous>, transform_indices = @transform_3, window_bounds = array<i64: 512, 128>}, {pipeline_mode = #tpu.pipeline_mode<synchronous>, transform_indices = @transform_4, window_bounds = array<i64: 1, 128>}, {transform_indices = @transform_5, window_bounds = array<i64: 1, 256, 128>}]} {
    %c0 = arith.constant 0 : index
    %c0_0 = arith.constant 0 : index
    %c0_1 = arith.constant 0 : index
    %0 = vector.load %arg2[%c0, %c0_0, %c0_1] : memref<1x256x128xbf16, #tpu.memory_space<vmem>>, vector<1x256x128xbf16>
    %1 = vector.shape_cast %0 : vector<1x256x128xbf16> to vector<256x128xbf16>
    %c0_2 = arith.constant 0 : index
    %c0_3 = arith.constant 0 : index
    %2 = vector.load %arg3[%c0_2, %c0_3] : memref<128x512xbf16, #tpu.memory_space<vmem>>, vector<128x512xbf16>
    %cst = arith.constant dense<0.000000e+00> : vector<256x512xf32>
    %3 = tpu.matmul %1, %2, %cst {dimension_numbers = #tpu.dot_dimension_numbers<[1], [0], [0], [1], [0, 0, 1, 1], [], []>} : vector<256x128xbf16>, vector<128x512xbf16>, vector<256x512xf32> -> vector<256x512xf32>
    %c0_4 = arith.constant 0 : index
    %c0_5 = arith.constant 0 : index
    %4 = vector.load %arg4[%c0_4, %c0_5] : memref<1x512xf32, #tpu.memory_space<vmem>>, vector<1x512xf32>
    %5 = vector.broadcast %4 : vector<1x512xf32> to vector<256x512xf32>
    %6 = arith.addf %3, %5 : vector<256x512xf32>
    %cst_6 = arith.constant 0.000000e+00 : f32
    %7 = vector.broadcast %cst_6 : f32 to vector<256x512xf32>
    %8 = arith.maximumf %6, %7 : vector<256x512xf32>
    %9 = arith.truncf %8 : vector<256x512xf32> to vector<256x512xbf16>
    %c0_7 = arith.constant 0 : index
    %c0_8 = arith.constant 0 : index
    %10 = vector.load %arg5[%c0_7, %c0_8] : memref<512x128xbf16, #tpu.memory_space<vmem>>, vector<512x128xbf16>
    %cst_9 = arith.constant dense<0.000000e+00> : vector<256x128xf32>
    %11 = tpu.matmul %9, %10, %cst_9 {dimension_numbers = #tpu.dot_dimension_numbers<[1], [0], [0], [1], [0, 0, 1, 1], [], []>} : vector<256x512xbf16>, vector<512x128xbf16>, vector<256x128xf32> -> vector<256x128xf32>
    %c0_10 = arith.constant 0 : index
    %c0_11 = arith.constant 0 : index
    %12 = vector.load %arg6[%c0_10, %c0_11] : memref<1x128xf32, #tpu.memory_space<vmem>>, vector<1x128xf32>
    %13 = vector.broadcast %12 : vector<1x128xf32> to vector<256x128xf32>
    %14 = arith.addf %11, %13 : vector<256x128xf32>
    %c0_12 = arith.constant 0 : index
    %c0_13 = arith.constant 0 : index
    %c0_14 = arith.constant 0 : index
    %15 = vector.load %arg7[%c0_12, %c0_13, %c0_14] : memref<1x256x128xf32, #tpu.memory_space<vmem>>, vector<1x256x128xf32>
    %16 = vector.shape_cast %15 : vector<1x256x128xf32> to vector<256x128xf32>
    %17 = vector.shape_cast %14 : vector<256x128xf32> to vector<1x256x128xf32>
    tpu.vector_store %arg7[%c0_12, %c0_13, %c0_14], %17 {strides = array<i32>} : memref<1x256x128xf32, #tpu.memory_space<vmem>>, vector<1x256x128xf32>,
    return
  }
  func.func @transform_0(%arg0: i32, %arg1: i32) -> (i32, i32, i32) {
    %c0_i32 = arith.constant 0 : i32
    %c0_i32_0 = arith.constant 0 : i32
    return %arg0, %arg1, %c0_i32 : i32, i32, i32
  }
  func.func @transform_1(%arg0: i32, %arg1: i32) -> (i32, i32) {
    %c0_i32 = arith.constant 0 : i32
    %c0_i32_0 = arith.constant 0 : i32
    %c0_i32_1 = arith.constant 0 : i32
    return %c0_i32, %c0_i32_0 : i32, i32
  }
  func.func @transform_2(%arg0: i32, %arg1: i32) -> (i32, i32) {
    %c0_i32 = arith.constant 0 : i32
    %c0_i32_0 = arith.constant 0 : i32
    %c0_i32_1 = arith.constant 0 : i32
    return %c0_i32, %c0_i32_0 : i32, i32
  }
  func.func @transform_3(%arg0: i32, %arg1: i32) -> (i32, i32) {
    %c0_i32 = arith.constant 0 : i32
    %c0_i32_0 = arith.constant 0 : i32
    %c0_i32_1 = arith.constant 0 : i32
    return %c0_i32, %c0_i32_0 : i32, i32
  }
  func.func @transform_4(%arg0: i32, %arg1: i32) -> (i32, i32) {
    %c0_i32 = arith.constant 0 : i32
    %c0_i32_0 = arith.constant 0 : i32
    %c0_i32_1 = arith.constant 0 : i32
    return %c0_i32, %c0_i32_0 : i32, i32
  }
  func.func @transform_5(%arg0: i32, %arg1: i32) -> (i32, i32, i32) {
    %c0_i32 = arith.constant 0 : i32
    %c0_i32_0 = arith.constant 0 : i32
    return %arg0, %arg1, %c0_i32 : i32, i32, i32
  }
}

</mosaic_0001>

<llo_original>
// kernel: rpn_forward.1
$region0: #{rpn_forward.1}
  #allocation0 [shape = 'u32[]', space=smem, size = 0x4, offset = 0x4, fixed_abs, tag = 'smem constant byte address 0x4 - core index']
  #allocation1 [shape = 'u32[144,128]{1,0:T(1,128)}', space=vmem, size = 0x12000, scoped, tag = 'internal scratch']
  %s0 = inlined_call_operand.vmem [shape: bf16[2,256,128], index: 0, kind: input, shape index: {}]
  %s1 = inlined_call_operand.vmem [shape: bf16[128,512], index: 1, kind: input, shape index: {}]
  %s2 = inlined_call_operand.vmem [shape: f32[1,512], index: 2, kind: input, shape index: {}]
  %s3 = inlined_call_operand.vmem [shape: bf16[512,128], index: 3, kind: input, shape index: {}]
  %s4 = inlined_call_operand.vmem [shape: f32[1,128], index: 4, kind: input, shape index: {}]
  %s5 = inlined_call_operand.vmem [shape: f32[2,256,128], index: 5, kind: output, shape index: {}]
  %s6 = sld [smem:[#allocation0]]
  $region53: #{rpn_forward.1} parent=0
    _
  %s8 = ssub.s32 1, %s6
  %s9 = scalar_select 0, %s8, %s6
  loop: start=0, step=1, limit=4
  $region2: #{rpn_forward.1} parent=0 // loop_pre_header
    _
  $region3: #{rpn_forward.1} parent=0 // loop_header
    %s11 = sphi 0, %s15
    %p12 = scmp.ge.s32.totalorder %s11, 4
    %s18 = sphi 0, %s30
    %s19 = sphi 0, %s26
    %s20 = sphi 0, %s18
    %s21 = sphi 0, %s19
    %s22 = sphi 0, %s20
    %s23 = sphi 0, %s21
    %s35 = sphi 0, %s37
    %s38 = sphi 0, %s35
    %s39 = sphi 0, %s38
    %s55 = sphi 0, %s39
    %s59 = sphi 0, %s59
    %s61 = sphi 0, %s59
    %s62 = sphi 0, %s61
    %s76 = sphi 0, %s62
    %s80 = sphi 0, %s80
    %s82 = sphi 0, %s80
    %s83 = sphi 0, %s82
    %s97 = sphi 0, %s83
    %s101 = sphi 0, %s101
    %s103 = sphi 0, %s101
    %s104 = sphi 0, %s103
    %s118 = sphi 0, %s104
    %s122 = sphi 0, %s122
    %s124 = sphi 0, %s122
    %s125 = sphi 0, %s124
    %s139 = sphi 0, %s125
    %s147 = sphi 0, %s149
    %s150 = sphi 0, %s147
    %s151 = sphi 0, %s150
    %s167 = sphi 0, %s151
  $region4: #{rpn_forward.1} parent=0 // loop_header_branch
    %14 = sbr.rel (%p12) target = $region8
  $region5: #{rpn_forward.1} parent=0 // loop_body
    %s16 = ssub.s32 %s11, 1
    %s17 = ssub.s32 %s11, 2
    %s24 = sadd.s32 1, %s19
    %p25 = scmp.ge.s32.totalorder %s24, 1
    %s26 = scalar_select %p25, 0, %s24
    %s27 = sadd.s32 1, %s18
    %s28 = scalar_select %p25, %s27, %s18
    %p29 = scmp.ge.s32.totalorder %s28, 2
    %s30 = scalar_select %p29, 0, %s28
    %s31 = ssub.s32 %s18, %s30
    %s32 = ssub.s32 %s19, %s26
    %s33 = sor.u32 %s31, %s32
    %p34 = scmp.eq.s32.totalorder %s33, 0
    %s36 = sadd.s32 %s35, 1
    %s37 = scalar_select %p34, %s35, %s36
    %p40 = pneg %p34
    %p41 = scmp.eq.s32.totalorder %s11, 1
    %p42 = por %p40, %p41
    %p43 = scmp.ne.s32.totalorder %s35, %s38
    %p44 = scmp.eq.s32.totalorder %s11, 0
    %p45 = por %p43, %p44
    %p46 = scmp.ne.s32.totalorder %s35, %s38
    %p47 = scmp.eq.s32.totalorder %s16, 1
    %p48 = por %p46, %p47
    %p49 = scmp.ne.s32.totalorder %s38, %s39
    %p50 = scmp.eq.s32.totalorder %s16, 0
    %p51 = por %p49, %p50
    %p52 = scmp.ne.s32.totalorder %s38, %s39
    %p53 = scmp.eq.s32.totalorder %s17, 1
    %p54 = por %p52, %p53
    %p56 = scmp.ne.s32.totalorder %s39, %s55
    %p57 = scmp.eq.s32.totalorder %s17, 0
    %p58 = por %p56, %p57
    %s60 = sadd.s32 %s59, 1
    %p63 = scmp.eq.s32.totalorder %s11, 1
    %p64 = scmp.ne.s32.totalorder %s59, %s61
    %p65 = scmp.eq.s32.totalorder %s11, 0
    %p66 = por %p64, %p65
    %p67 = scmp.ne.s32.totalorder %s59, %s61
    %p68 = scmp.eq.s32.totalorder %s16, 1
    %p69 = por %p67, %p68
    %p70 = scmp.ne.s32.totalorder %s61, %s62
    %p71 = scmp.eq.s32.totalorder %s16, 0
    %p72 = por %p70, %p71
    %p73 = scmp.ne.s32.totalorder %s61, %s62
    %p74 = scmp.eq.s32.totalorder %s17, 1
    %p75 = por %p73, %p74
    %p77 = scmp.ne.s32.totalorder %s62, %s76
    %p78 = scmp.eq.s32.totalorder %s17, 0
    %p79 = por %p77, %p78
    %s81 = sadd.s32 %s80, 1
    %p84 = scmp.eq.s32.totalorder %s11, 1
    %p85 = scmp.ne.s32.totalorder %s80, %s82
    %p86 = scmp.eq.s32.totalorder %s11, 0
    %p87 = por %p85, %p86
    %p88 = scmp.ne.s32.totalorder %s80, %s82
    %p89 = scmp.eq.s32.totalorder %s16, 1
    %p90 = por %p88, %p89
    %p91 = scmp.ne.s32.totalorder %s82, %s83
    %p92 = scmp.eq.s32.totalorder %s16, 0
    %p93 = por %p91, %p92
    %p94 = scmp.ne.s32.totalorder %s82, %s83
    %p95 = scmp.eq.s32.totalorder %s17, 1
    %p96 = por %p94, %p95
    %p98 = scmp.ne.s32.totalorder %s83, %s97
    %p99 = scmp.eq.s32.totalorder %s17, 0
    %p100 = por %p98, %p99
    %s102 = sadd.s32 %s101, 1
    %p105 = scmp.eq.s32.totalorder %s11, 1
    %p106 = scmp.ne.s32.totalorder %s101, %s103
    %p107 = scmp.eq.s32.totalorder %s11, 0
    %p108 = por %p106, %p107
    %p109 = scmp.ne.s32.totalorder %s101, %s103
    %p110 = scmp.eq.s32.totalorder %s16, 1
    %p111 = por %p109, %p110
    %p112 = scmp.ne.s32.totalorder %s103, %s104
    %p113 = scmp.eq.s32.totalorder %s16, 0
    %p114 = por %p112, %p113
    %p115 = scmp.ne.s32.totalorder %s103, %s104
    %p116 = scmp.eq.s32.totalorder %s17, 1
    %p117 = por %p115, %p116
    %p119 = scmp.ne.s32.totalorder %s104, %s118
    %p120 = scmp.eq.s32.totalorder %s17, 0
    %p121 = por %p119, %p120
    %s123 = sadd.s32 %s122, 1
    %p126 = scmp.eq.s32.totalorder %s11, 1
    %p127 = scmp.ne.s32.totalorder %s122, %s124
    %p128 = scmp.eq.s32.totalorder %s11, 0
    %p129 = por %p127, %p128
    %p130 = scmp.ne.s32.totalorder %s122, %s124
    %p131 = scmp.eq.s32.totalorder %s16, 1
    %p132 = por %p130, %p131
    %p133 = scmp.ne.s32.totalorder %s124, %s125
    %p134 = scmp.eq.s32.totalorder %s16, 0
    %p135 = por %p133, %p134
    %p136 = scmp.ne.s32.totalorder %s124, %s125
    %p137 = scmp.eq.s32.totalorder %s17, 1
    %p138 = por %p136, %p137
    %p140 = scmp.ne.s32.totalorder %s125, %s139
    %p141 = scmp.eq.s32.totalorder %s17, 0
    %p142 = por %p140, %p141
    %s143 = ssub.s32 %s18, %s30
    %s144 = ssub.s32 %s19, %s26
    %s145 = sor.u32 %s143, %s144
    %p146 = scmp.eq.s32.totalorder %s145, 0
    %s148 = sadd.s32 %s147, 1
    %s149 = scalar_select %p146, %s147, %s148
    %p152 = pneg %p146
    %p153 = scmp.eq.s32.totalorder %s11, 1
    %p154 = por %p152, %p153
    %p155 = scmp.ne.s32.totalorder %s147, %s150
    %p156 = scmp.eq.s32.totalorder %s11, 0
    %p157 = por %p155, %p156
    %p158 = scmp.ne.s32.totalorder %s147, %s150
    %p159 = scmp.eq.s32.totalorder %s16, 1
    %p160 = por %p158, %p159
    %p161 = scmp.ne.s32.totalorder %s150, %s151
    %p162 = scmp.eq.s32.totalorder %s16, 0
    %p163 = por %p161, %p162
    %p164 = scmp.ne.s32.totalorder %s150, %s151
    %p165 = scmp.eq.s32.totalorder %s17, 1
    %p166 = por %p164, %p165
    %p168 = scmp.ne.s32.totalorder %s151, %s167
    %p169 = scmp.eq.s32.totalorder %s17, 0
    %p170 = por %p168, %p169
    %p171 = scmp.le.s32.totalorder 1, %s11
    %p172 = scmp.lt.s32.totalorder %s11, 3
    %p173 = pnand %p171, %p172
    %p174 = pneg %p173
    // Predicated region
    $region9: #{rpn_forward.1} parent=5 // pred_check
      _
    $region10: #{rpn_forward.1} parent=5 // pred_check_branch
      %176 = sbr.rel (%p173) target = $region12
    $region11: #{rpn_forward.1} parent=5 // pred_region
      %s177 = ssub.s32 %s11, 1
      // Predicated region
      $region13: #{rpn_forward.1} parent=11 // pred_check
        %p178 = pneg %p72
      $region14: #{rpn_forward.1} parent=11 // pred_check_branch
        %180 = sbr.rel (%p178) target = $region16
      $region15: #{rpn_forward.1} parent=11 // pred_region
        _
      $region16: #{rpn_forward.1} parent=11 // pred_fallthru
        _
      // Predicated region
      $region17: #{rpn_forward.1} parent=11 // pred_check
        %p181 = pneg %p93
      $region18: #{rpn_forward.1} parent=11 // pred_check_branch
        %183 = sbr.rel (%p181) target = $region20
      $region19: #{rpn_forward.1} parent=11 // pred_region
        _
      $region20: #{rpn_forward.1} parent=11 // pred_fallthru
        _
      // Predicated region
      $region21: #{rpn_forward.1} parent=11 // pred_check
        %p184 = pneg %p114
      $region22: #{rpn_forward.1} parent=11 // pred_check_branch
        %186 = sbr.rel (%p184) target = $region24
      $region23: #{rpn_forward.1} parent=11 // pred_region
        _
      $region24: #{rpn_forward.1} parent=11 // pred_fallthru
        _
      // Predicated region
      $region25: #{rpn_forward.1} parent=11 // pred_check
        %p187 = pneg %p135
      $region26: #{rpn_forward.1} parent=11 // pred_check_branch
        %189 = sbr.rel (%p187) target = $region28
      $region27: #{rpn_forward.1} parent=11 // pred_region
        _
      $region28: #{rpn_forward.1} parent=11 // pred_fallthru
        _
    $region12: #{rpn_forward.1} parent=5 // pred_fallthru
      _
    %p190 = scmp.lt.s32.totalorder %s11, 2
    // Predicated region
    $region29: #{rpn_forward.1} parent=5 // pred_check
      %p191 = pneg %p190
    $region30: #{rpn_forward.1} parent=5 // pred_check_branch
      %193 = sbr.rel (%p191) target = $region32
    $region31: #{rpn_forward.1} parent=5 // pred_region
      // Predicated region
      $region33: #{rpn_forward.1} parent=31 // pred_check
        %p194 = pneg %p45
      $region34: #{rpn_forward.1} parent=31 // pred_check_branch
        %196 = sbr.rel (%p194) target = $region36
      $region35: #{rpn_forward.1} parent=31 // pred_region
        %s197 = smul.u32 32, %s19
        %p198 = scmp.lt.s32.totalorder %s18, 1
        %s199 = scalar_select %p198, %s18, 1
        %p200 = scmp.lt.s32.totalorder %s197, 31
        %s201 = scalar_select %p200, %s197, 31
        %s202 = smul.addr %s199, 32
        %s203 = sadd.s32 %s201, %s202
        %s204 = smul.addr %s203, 4
        %s205 = scalar_lea.vmem %s0, %s204
        %s206 = smul.u32 32, %s19
      $region36: #{rpn_forward.1} parent=31 // pred_fallthru
        _
    $region32: #{rpn_forward.1} parent=5 // pred_fallthru
      _
    %p207 = scmp.le.s32.totalorder 1, %s11
    %p208 = scmp.lt.s32.totalorder %s11, 3
    %p209 = pnand %p207, %p208
    %p210 = pneg %p209
    // Predicated region
    $region37: #{rpn_forward.1} parent=5 // pred_check
      _
    $region38: #{rpn_forward.1} parent=5 // pred_check_branch
      %212 = sbr.rel (%p209) target = $region40
    $region39: #{rpn_forward.1} parent=5 // pred_region
      %s213 = ssub.s32 %s11, 1
      %s214 = smul.u32 32, %s21
      %p215 = scmp.lt.s32.totalorder %s20, 1
      %s216 = scalar_select %p215, %s20, 1
      %p217 = scmp.lt.s32.totalorder %s214, 31
      %s218 = scalar_select %p217, %s214, 31
      %s219 = smul.addr %s216, 32
      %s220 = sadd.s32 %s218, %s219
      %s221 = smul.addr %s220, 4
      %s222 = scalar_lea.vmem %s0, %s221
      %p223 = pneg %p51
      %p224 = pneg %p48
      %p225 = pneg %p72
      %p226 = pneg %p69
      %p227 = pneg %p93
      %p228 = pneg %p90
      %p229 = pneg %p114
      %p230 = pneg %p111
      %p231 = pneg %p135
      %p232 = pneg %p132
      %p233 = pneg %p163
      %p234 = pneg %p160
      %s235 = smul.u32 32, %s21
      %p236 = scmp.lt.s32.totalorder %s20, 1
      %s237 = scalar_select %p236, %s20, 1
      %p238 = scmp.lt.s32.totalorder %s235, 31
      %s239 = scalar_select %p238, %s235, 31
      %s240 = smul.addr %s237, 32
      %s241 = sadd.s32 %s239, %s240
      %s242 = smul.addr %s241, 8
      %s243 = scalar_lea.vmem %s5, %s242
      %s244 = smul.u32 32, %s21
      %p245 = scmp.lt.s32.totalorder %s20, 1
      %s246 = scalar_select %p245, %s20, 1
      %p247 = scmp.lt.s32.totalorder %s244, 31
      %s248 = scalar_select %p247, %s244, 31
      %s249 = smul.addr %s246, 32
      %s250 = sadd.s32 %s248, %s249
      %s251 = smul.addr %s250, 4
      %s252 = scalar_lea.vmem %s0, %s251
      %s253 = smul.u32 32, %s21
      %s254 = smul.u32 32, %s21
      %p255 = scmp.lt.s32.totalorder %s20, 1
      %s256 = scalar_select %p255, %s20, 1
      %p257 = scmp.lt.s32.totalorder %s254, 31
      %s258 = scalar_select %p257, %s254, 31
      %s259 = smul.addr %s256, 32
      %s260 = sadd.s32 %s258, %s259
      %s261 = smul.addr %s260, 8
      %s262 = scalar_lea.vmem %s5, %s261
      %s263 = smul.u32 32, %s21
      %v265 = vld [vmem:[%s252] sm:$0xf]
      %v266 = vld [vmem:[%s252 + $0x4] sm:$0xf]
      %v267 = vld [vmem:[%s252 + $0x8] sm:$0xf]
      %v268 = vld [vmem:[%s252 + $0xc] sm:$0xf]
      %v269 = vld [vmem:[%s252 + $0x10] sm:$0xf]
      %v270 = vld [vmem:[%s252 + $0x14] sm:$0xf]
      %v271 = vld [vmem:[%s252 + $0x18] sm:$0xf]
      %v272 = vld [vmem:[%s252 + $0x1c] sm:$0xf]
      %v273 = vld [vmem:[%s252 + $0x20] sm:$0xf]
      %v274 = vld [vmem:[%s252 + $0x24] sm:$0xf]
      %v275 = vld [vmem:[%s252 + $0x28] sm:$0xf]
      %v276 = vld [vmem:[%s252 + $0x2c] sm:$0xf]
      %v277 = vld [vmem:[%s252 + $0x30] sm:$0xf]
      %v278 = vld [vmem:[%s252 + $0x34] sm:$0xf]
      %v279 = vld [vmem:[%s252 + $0x38] sm:$0xf]
      %v280 = vld [vmem:[%s252 + $0x3c] sm:$0xf]
      %v281 = vld [vmem:[%s252 + $0x40] sm:$0xf]
      %v282 = vld [vmem:[%s252 + $0x44] sm:$0xf]
      %v283 = vld [vmem:[%s252 + $0x48] sm:$0xf]
      %v284 = vld [vmem:[%s252 + $0x4c] sm:$0xf]
      %v285 = vld [vmem:[%s252 + $0x50] sm:$0xf]
      %v286 = vld [vmem:[%s252 + $0x54] sm:$0xf]
      %v287 = vld [vmem:[%s252 + $0x58] sm:$0xf]
      %v288 = vld [vmem:[%s252 + $0x5c] sm:$0xf]
      %v289 = vld [vmem:[%s252 + $0x60] sm:$0xf]
      %v290 = vld [vmem:[%s252 + $0x64] sm:$0xf]
      %v291 = vld [vmem:[%s252 + $0x68] sm:$0xf]
      %v292 = vld [vmem:[%s252 + $0x6c] sm:$0xf]
      %v293 = vld [vmem:[%s252 + $0x70] sm:$0xf]
      %v294 = vld [vmem:[%s252 + $0x74] sm:$0xf]
      %v295 = vld [vmem:[%s252 + $0x78] sm:$0xf]
      %v296 = vld [vmem:[%s252 + $0x7c] sm:$0xf]
      %v297 = vld [vmem:[%s1] sm:$0xff]
      %v298 = vld [vmem:[%s1 + $0x8] sm:$0xff]
      %v299 = vld [vmem:[%s1 + $0x10] sm:$0xff]
      %v300 = vld [vmem:[%s1 + $0x18] sm:$0xff]
      %v301 = vld [vmem:[%s1 + $0x20] sm:$0xff]
      %v302 = vld [vmem:[%s1 + $0x28] sm:$0xff]
      %v303 = vld [vmem:[%s1 + $0x30] sm:$0xff]
      %v304 = vld [vmem:[%s1 + $0x38] sm:$0xff]
      %v305 = vld [vmem:[%s1 + $0x40] sm:$0xff]
      %v306 = vld [vmem:[%s1 + $0x48] sm:$0xff]
      %v307 = vld [vmem:[%s1 + $0x50] sm:$0xff]
      %v308 = vld [vmem:[%s1 + $0x58] sm:$0xff]
      %v309 = vld [vmem:[%s1 + $0x60] sm:$0xff]
      %v310 = vld [vmem:[%s1 + $0x68] sm:$0xff]
      %v311 = vld [vmem:[%s1 + $0x70] sm:$0xff]
      %v312 = vld [vmem:[%s1 + $0x78] sm:$0xff]
      %v313 = vld [vmem:[%s1 + $0x80] sm:$0xff]
      %v314 = vld [vmem:[%s1 + $0x88] sm:$0xff]
      %v315 = vld [vmem:[%s1 + $0x90] sm:$0xff]
      %v316 = vld [vmem:[%s1 + $0x98] sm:$0xff]
      %v317 = vld [vmem:[%s1 + $0xa0] sm:$0xff]
      %v318 = vld [vmem:[%s1 + $0xa8] sm:$0xff]
      %v319 = vld [vmem:[%s1 + $0xb0] sm:$0xff]
      %v320 = vld [vmem:[%s1 + $0xb8] sm:$0xff]
      %v321 = vld [vmem:[%s1 + $0xc0] sm:$0xff]
      %v322 = vld [vmem:[%s1 + $0xc8] sm:$0xff]
      %v323 = vld [vmem:[%s1 + $0xd0] sm:$0xff]
      %v324 = vld [vmem:[%s1 + $0xd8] sm:$0xff]
      %v325 = vld [vmem:[%s1 + $0xe0] sm:$0xff]
      %v326 = vld [vmem:[%s1 + $0xe8] sm:$0xff]
      %v327 = vld [vmem:[%s1 + $0xf0] sm:$0xff]
      %v328 = vld [vmem:[%s1 + $0xf8] sm:$0xff]
      %v329 = vld [vmem:[%s2] sm:$0xf]
      %v331 = vlaneseq
      %v332 = vshrl.u32 %v331, 7
      %v333 = vsub.s32 0, %v332
      %v334 = vrot.slane %v329, %v333
      %v335 = vlaneseq
      %v336 = vshrl.u32 %v335, 7
      %v337 = vsub.s32 1, %v336
      %v338 = vrot.slane %v329, %v337
      %v339 = vlaneseq
      %v340 = vshrl.u32 %v339, 7
      %v341 = vsub.s32 2, %v340
      %v342 = vrot.slane %v329, %v341
      %v343 = vlaneseq
      %v344 = vshrl.u32 %v343, 7
      %v345 = vsub.s32 3, %v344
      %v346 = vrot.slane %v329, %v345
      %v383 = vunpack.c.l.b16 %v265
      %v384 = vunpack.c.l.b16 %v266
      %v385 = vunpack.c.l.b16 %v267
      %v386 = vunpack.c.l.b16 %v268
      %v387 = vunpack.c.l.b16 %v269
      %v388 = vunpack.c.l.b16 %v270
      %v389 = vunpack.c.l.b16 %v271
      %v390 = vunpack.c.l.b16 %v272
      %v391 = vunpack.c.l.b16 %v273
      %v392 = vunpack.c.l.b16 %v274
      %v393 = vunpack.c.l.b16 %v275
      %v394 = vunpack.c.l.b16 %v276
      %v395 = vunpack.c.l.b16 %v277
      %v396 = vunpack.c.l.b16 %v278
      %v397 = vunpack.c.l.b16 %v279
      %v398 = vunpack.c.l.b16 %v280
      %v399 = vunpack.c.l.b16 %v281
      %v400 = vunpack.c.l.b16 %v282
      %v401 = vunpack.c.l.b16 %v283
      %v402 = vunpack.c.l.b16 %v284
      %v403 = vunpack.c.l.b16 %v285
      %v404 = vunpack.c.l.b16 %v286
      %v405 = vunpack.c.l.b16 %v287
      %v406 = vunpack.c.l.b16 %v288
      %v407 = vunpack.c.l.b16 %v289
      %v408 = vunpack.c.l.b16 %v290
      %v409 = vunpack.c.l.b16 %v291
      %v410 = vunpack.c.l.b16 %v292
      %v411 = vunpack.c.l.b16 %v293
      %v412 = vunpack.c.l.b16 %v294
      %v413 = vunpack.c.l.b16 %v295
      %v414 = vunpack.c.l.b16 %v296
      %v415 = vpack.c.b16 %v384, %v383
      %v416 = vpack.c.b16 %v386, %v385
      %v417 = vpack.c.b16 %v388, %v387
      %v418 = vpack.c.b16 %v390, %v389
      %v419 = vpack.c.b16 %v392, %v391
      %v420 = vpack.c.b16 %v394, %v393
      %v421 = vpack.c.b16 %v396, %v395
      %v422 = vpack.c.b16 %v398, %v397
      %v423 = vpack.c.b16 %v400, %v399
      %v424 = vpack.c.b16 %v402, %v401
      %v425 = vpack.c.b16 %v404, %v403
      %v426 = vpack.c.b16 %v406, %v405
      %v427 = vpack.c.b16 %v408, %v407
      %v428 = vpack.c.b16 %v410, %v409
      %v429 = vpack.c.b16 %v412, %v411
      %v430 = vpack.c.b16 %v414, %v413
      %v479 = vunpack.c.l.b16 %v297
      %v480 = vunpack.c.h.b16 %v297
      %v481 = vunpack.c.l.b16 %v298
      %v482 = vunpack.c.h.b16 %v298
      %v483 = vunpack.c.l.b16 %v299
      %v484 = vunpack.c.h.b16 %v299
      %v485 = vunpack.c.l.b16 %v300
      %v486 = vunpack.c.h.b16 %v300
      %v487 = vunpack.c.l.b16 %v301
      %v488 = vunpack.c.h.b16 %v301
      %v489 = vunpack.c.l.b16 %v302
      %v490 = vunpack.c.h.b16 %v302
      %v491 = vunpack.c.l.b16 %v303
      %v492 = vunpack.c.h.b16 %v303
      %v493 = vunpack.c.l.b16 %v304
      %v494 = vunpack.c.h.b16 %v304
      %v495 = vunpack.c.l.b16 %v305
      %v496 = vunpack.c.h.b16 %v305
      %v497 = vunpack.c.l.b16 %v306
      %v498 = vunpack.c.h.b16 %v306
      %v499 = vunpack.c.l.b16 %v307
      %v500 = vunpack.c.h.b16 %v307
      %v501 = vunpack.c.l.b16 %v308
      %v502 = vunpack.c.h.b16 %v308
      %v503 = vunpack.c.l.b16 %v309
      %v504 = vunpack.c.h.b16 %v309
      %v505 = vunpack.c.l.b16 %v310
      %v506 = vunpack.c.h.b16 %v310
      %v507 = vunpack.c.l.b16 %v311
      %v508 = vunpack.c.h.b16 %v311
      %v509 = vunpack.c.l.b16 %v312
      %v510 = vunpack.c.h.b16 %v312
      %v511 = vunpack.c.l.b16 %v313
      %v512 = vunpack.c.h.b16 %v313
      %v513 = vunpack.c.l.b16 %v314
      %v514 = vunpack.c.h.b16 %v314
      %v515 = vunpack.c.l.b16 %v315
      %v516 = vunpack.c.h.b16 %v315
      %v517 = vunpack.c.l.b16 %v316
      %v518 = vunpack.c.h.b16 %v316
      %v519 = vunpack.c.l.b16 %v317
      %v520 = vunpack.c.h.b16 %v317
      %v521 = vunpack.c.l.b16 %v318
      %v522 = vunpack.c.h.b16 %v318
      %v523 = vunpack.c.l.b16 %v319
      %v524 = vunpack.c.h.b16 %v319
      %v525 = vunpack.c.l.b16 %v320
      %v526 = vunpack.c.h.b16 %v320
      %v527 = vunpack.c.l.b16 %v321
      %v528 = vunpack.c.h.b16 %v321
      %v529 = vunpack.c.l.b16 %v322
      %v530 = vunpack.c.h.b16 %v322
      %v531 = vunpack.c.l.b16 %v323
      %v532 = vunpack.c.h.b16 %v323
      %v533 = vunpack.c.l.b16 %v324
      %v534 = vunpack.c.h.b16 %v324
      %v535 = vunpack.c.l.b16 %v325
      %v536 = vunpack.c.h.b16 %v325
      %v537 = vunpack.c.l.b16 %v326
      %v538 = vunpack.c.h.b16 %v326
      %v539 = vunpack.c.l.b16 %v327
      %v540 = vunpack.c.h.b16 %v327
      %v541 = vunpack.c.l.b16 %v328
      %v542 = vunpack.c.h.b16 %v328
      %v543 = vpack.c.b16 %v483, %v479
      %v544 = vpack.c.b16 %v484, %v480
      %v545 = vpack.c.b16 %v485, %v481
      %v546 = vpack.c.b16 %v486, %v482
      %v547 = vpack.c.b16 %v491, %v487
      %v548 = vpack.c.b16 %v492, %v488
      %v549 = vpack.c.b16 %v493, %v489
      %v550 = vpack.c.b16 %v494, %v490
      %v551 = vpack.c.b16 %v499, %v495
      %v552 = vpack.c.b16 %v500, %v496
      %v553 = vpack.c.b16 %v501, %v497
      %v554 = vpack.c.b16 %v502, %v498
      %v555 = vpack.c.b16 %v507, %v503
      %v556 = vpack.c.b16 %v508, %v504
      %v557 = vpack.c.b16 %v509, %v505
      %v558 = vpack.c.b16 %v510, %v506
      %v559 = vpack.c.b16 %v515, %v511
      %v560 = vpack.c.b16 %v516, %v512
      %v561 = vpack.c.b16 %v517, %v513
      %v562 = vpack.c.b16 %v518, %v514
      %v563 = vpack.c.b16 %v523, %v519
      %v564 = vpack.c.b16 %v524, %v520
      %v565 = vpack.c.b16 %v525, %v521
      %v566 = vpack.c.b16 %v526, %v522
      %v567 = vpack.c.b16 %v531, %v527
      %v568 = vpack.c.b16 %v532, %v528
      %v569 = vpack.c.b16 %v533, %v529
      %v570 = vpack.c.b16 %v534, %v530
      %v571 = vpack.c.b16 %v539, %v535
      %v572 = vpack.c.b16 %v540, %v536
      %v573 = vpack.c.b16 %v541, %v537
      %v574 = vpack.c.b16 %v542, %v538
      %607 = vmatprep.subr.bf16.mxu0 %v572
      %608 = vmatpush1.bf16.msra.mxu0 %v571
      %609 = vmatprep.subr.bf16.mxu0 %v568
      %610 = vmatpush1.bf16.msra.mxu0 %v567
      %611 = vmatprep.subr.bf16.mxu0 %v564
      %612 = vmatpush1.bf16.msra.mxu0 %v563
      %613 = vmatprep.subr.bf16.mxu0 %v560
      %614 = vmatpush1.bf16.msra.mxu0 %v559
      %615 = vmatprep.subr.bf16.mxu0 %v556
      %616 = vmatpush1.bf16.msra.mxu0 %v555
      %617 = vmatprep.subr.bf16.mxu0 %v552
      %618 = vmatpush1.bf16.msra.mxu0 %v551
      %619 = vmatprep.subr.bf16.mxu0 %v548
      %620 = vmatpush1.bf16.msra.mxu0 %v547
      %621 = vmatprep.subr.bf16.mxu0 %v544
      %622 = vmatpush1.bf16.msra.mxu0 %v543
      %623 = vmatprep.subr.bf16.mxu0 0
      %624 = vmatpush2.bf16.msra.mxu0 0
      %625 = vmatprep.subr.bf16.mxu0 0
      %626 = vmatpush2.bf16.msra.mxu0 0
      %627 = vmatprep.subr.bf16.mxu0 0
      %628 = vmatpush2.bf16.msra.mxu0 0
      %629 = vmatprep.subr.bf16.mxu0 0
      %630 = vmatpush2.bf16.msra.mxu0 0
      %631 = vmatprep.subr.bf16.mxu0 0
      %632 = vmatpush2.bf16.msra.mxu0 0
      %633 = vmatprep.subr.bf16.mxu0 0
      %634 = vmatpush2.bf16.msra.mxu0 0
      %635 = vmatprep.subr.bf16.mxu0 0
      %636 = vmatpush2.bf16.msra.mxu0 0
      %637 = vmatprep.subr.bf16.mxu0 0
      %638 = vmatpush2.bf16.msra.mxu0 0
      %639 = vmatprep.mubr.bf16.mxu0 0
      %640 = vmatmul.mubr.bf16.gmra.mxu0 %v415
      %v641 = vpop.f32.mrf.mxu0
      %v642 = vadd.f32 %v334, %v641
      %v643 = vpop.f32.mrf.mxu0
      %v644 = vadd.f32 %v338, %v643
      %v645 = vpop.f32.mrf.mxu0
      %v646 = vadd.f32 %v334, %v645
      %v647 = vpop.f32.mrf.mxu0
      %v648 = vadd.f32 %v338, %v647
      %649 = vmatprep.mubr.bf16.mxu0 0
      %650 = vmatmul.mubr.bf16.gmra.mxu0 %v416
      %v651 = vpop.f32.mrf.mxu0
      %v652 = vadd.f32 %v334, %v651
      %v653 = vpop.f32.mrf.mxu0
      %v654 = vadd.f32 %v338, %v653
      %v655 = vpop.f32.mrf.mxu0
      %v656 = vadd.f32 %v334, %v655
      %v657 = vpop.f32.mrf.mxu0
      %v658 = vadd.f32 %v338, %v657
      %659 = vmatprep.mubr.bf16.mxu0 0
      %660 = vmatmul.mubr.bf16.gmra.mxu0 %v417
      %v661 = vpop.f32.mrf.mxu0
      %v662 = vadd.f32 %v334, %v661
      %v663 = vpop.f32.mrf.mxu0
      %v664 = vadd.f32 %v338, %v663
      %v665 = vpop.f32.mrf.mxu0
      %v666 = vadd.f32 %v334, %v665
      %v667 = vpop.f32.mrf.mxu0
      %v668 = vadd.f32 %v338, %v667
      %669 = vmatprep.mubr.bf16.mxu0 0
      %670 = vmatmul.mubr.bf16.gmra.mxu0 %v418
      %v671 = vpop.f32.mrf.mxu0
      %v672 = vadd.f32 %v334, %v671
      %v673 = vpop.f32.mrf.mxu0
      %v674 = vadd.f32 %v338, %v673
      %v675 = vpop.f32.mrf.mxu0
      %v676 = vadd.f32 %v334, %v675
      %v677 = vpop.f32.mrf.mxu0
      %v678 = vadd.f32 %v338, %v677
      %679 = vmatprep.mubr.bf16.mxu0 0
      %680 = vmatmul.mubr.bf16.gmra.mxu0 %v419
      %v681 = vpop.f32.mrf.mxu0
      %v682 = vadd.f32 %v334, %v681
      %v683 = vpop.f32.mrf.mxu0
      %v684 = vadd.f32 %v338, %v683
      %v685 = vpop.f32.mrf.mxu0
      %v686 = vadd.f32 %v334, %v685
      %v687 = vpop.f32.mrf.mxu0
      %v688 = vadd.f32 %v338, %v687
      %689 = vmatprep.mubr.bf16.mxu0 0
      %690 = vmatmul.mubr.bf16.gmra.mxu0 %v420
      %v691 = vpop.f32.mrf.mxu0
      %v692 = vadd.f32 %v334, %v691
      %v693 = vpop.f32.mrf.mxu0
      %v694 = vadd.f32 %v338, %v693
      %v695 = vpop.f32.mrf.mxu0
      %v696 = vadd.f32 %v334, %v695
      %v697 = vpop.f32.mrf.mxu0
      %v698 = vadd.f32 %v338, %v697
      %699 = vmatprep.mubr.bf16.mxu0 0
      %700 = vmatmul.mubr.bf16.gmra.mxu0 %v421
      %v701 = vpop.f32.mrf.mxu0
      %v702 = vadd.f32 %v334, %v701
      %v703 = vpop.f32.mrf.mxu0
      %v704 = vadd.f32 %v338, %v703
      %v705 = vpop.f32.mrf.mxu0
      %v706 = vadd.f32 %v334, %v705
      %v707 = vpop.f32.mrf.mxu0
      %v708 = vadd.f32 %v338, %v707
      %709 = vmatprep.mubr.bf16.mxu0 0
      %710 = vmatmul.mubr.bf16.gmra.mxu0 %v422
      %v711 = vpop.f32.mrf.mxu0
      %v712 = vadd.f32 %v334, %v711
      %v713 = vpop.f32.mrf.mxu0
      %v714 = vadd.f32 %v338, %v713
      %v715 = vpop.f32.mrf.mxu0
      %v716 = vadd.f32 %v334, %v715
      %v717 = vpop.f32.mrf.mxu0
      %v718 = vadd.f32 %v338, %v717
      %719 = vmatprep.mubr.bf16.mxu0 0
      %720 = vmatmul.mubr.bf16.gmra.mxu0 %v423
      %v721 = vpop.f32.mrf.mxu0
      %v722 = vadd.f32 %v334, %v721
      %v723 = vpop.f32.mrf.mxu0
      %v724 = vadd.f32 %v338, %v723
      %v725 = vpop.f32.mrf.mxu0
      %v726 = vadd.f32 %v334, %v725
      %v727 = vpop.f32.mrf.mxu0
      %v728 = vadd.f32 %v338, %v727
      %729 = vmatprep.mubr.bf16.mxu0 0
      %730 = vmatmul.mubr.bf16.gmra.mxu0 %v424
      %v731 = vpop.f32.mrf.mxu0
      %v732 = vadd.f32 %v334, %v731
      %v733 = vpop.f32.mrf.mxu0
      %v734 = vadd.f32 %v338, %v733
      %v735 = vpop.f32.mrf.mxu0
      %v736 = vadd.f32 %v334, %v735
      %v737 = vpop.f32.mrf.mxu0
      %v738 = vadd.f32 %v338, %v737
      %739 = vmatprep.mubr.bf16.mxu0 0
      %740 = vmatmul.mubr.bf16.gmra.mxu0 %v425
      %v741 = vpop.f32.mrf.mxu0
      %v742 = vadd.f32 %v334, %v741
      %v743 = vpop.f32.mrf.mxu0
      %v744 = vadd.f32 %v338, %v743
      %v745 = vpop.f32.mrf.mxu0
      %v746 = vadd.f32 %v334, %v745
      %v747 = vpop.f32.mrf.mxu0
      %v748 = vadd.f32 %v338, %v747
      %749 = vmatprep.mubr.bf16.mxu0 0
      %750 = vmatmul.mubr.bf16.gmra.mxu0 %v426
      %v751 = vpop.f32.mrf.mxu0
      %v752 = vadd.f32 %v334, %v751
      %v753 = vpop.f32.mrf.mxu0
      %v754 = vadd.f32 %v338, %v753
      %v755 = vpop.f32.mrf.mxu0
      %v756 = vadd.f32 %v334, %v755
      %v757 = vpop.f32.mrf.mxu0
      %v758 = vadd.f32 %v338, %v757
      %759 = vmatprep.mubr.bf16.mxu0 0
      %760 = vmatmul.mubr.bf16.gmra.mxu0 %v427
      %v761 = vpop.f32.mrf.mxu0
      %v762 = vadd.f32 %v334, %v761
      %v763 = vpop.f32.mrf.mxu0
      %v764 = vadd.f32 %v338, %v763
      %v765 = vpop.f32.mrf.mxu0
      %v766 = vadd.f32 %v334, %v765
      %v767 = vpop.f32.mrf.mxu0
      %v768 = vadd.f32 %v338, %v767
      %769 = vmatprep.mubr.bf16.mxu0 0
      %770 = vmatmul.mubr.bf16.gmra.mxu0 %v428
      %v771 = vpop.f32.mrf.mxu0
      %v772 = vadd.f32 %v334, %v771
      %v773 = vpop.f32.mrf.mxu0
      %v774 = vadd.f32 %v338, %v773
      %v775 = vpop.f32.mrf.mxu0
      %v776 = vadd.f32 %v334, %v775
      %v777 = vpop.f32.mrf.mxu0
      %v778 = vadd.f32 %v338, %v777
      %779 = vmatprep.mubr.bf16.mxu0 0
      %780 = vmatmul.mubr.bf16.gmra.mxu0 %v429
      %v781 = vpop.f32.mrf.mxu0
      %v782 = vadd.f32 %v334, %v781
      %v783 = vpop.f32.mrf.mxu0
      %v784 = vadd.f32 %v338, %v783
      %v785 = vpop.f32.mrf.mxu0
      %v786 = vadd.f32 %v334, %v785
      %v787 = vpop.f32.mrf.mxu0
      %v788 = vadd.f32 %v338, %v787
      %789 = vmatprep.mubr.bf16.mxu0 0
      %790 = vmatmul.mubr.bf16.gmra.mxu0 %v430
      %v791 = vpop.f32.mrf.mxu0
      %v792 = vadd.f32 %v334, %v791
      %v793 = vpop.f32.mrf.mxu0
      %v794 = vadd.f32 %v338, %v793
      %v795 = vpop.f32.mrf.mxu0
      %v796 = vadd.f32 %v334, %v795
      %v797 = vpop.f32.mrf.mxu0
      %v798 = vadd.f32 %v338, %v797
      %799 = vdwg.mxu0
      %800 = vmatprep.subr.bf16.mxu0 %v574
      %801 = vmatpush1.bf16.msra.mxu0 %v573
      %802 = vmatprep.subr.bf16.mxu0 %v570
      %803 = vmatpush1.bf16.msra.mxu0 %v569
      %804 = vmatprep.subr.bf16.mxu0 %v566
      %805 = vmatpush1.bf16.msra.mxu0 %v565
      %806 = vmatprep.subr.bf16.mxu0 %v562
      %807 = vmatpush1.bf16.msra.mxu0 %v561
      %808 = vmatprep.subr.bf16.mxu0 %v558
      %809 = vmatpush1.bf16.msra.mxu0 %v557
      %810 = vmatprep.subr.bf16.mxu0 %v554
      %811 = vmatpush1.bf16.msra.mxu0 %v553
      %812 = vmatprep.subr.bf16.mxu0 %v550
      %813 = vmatpush1.bf16.msra.mxu0 %v549
      %814 = vmatprep.subr.bf16.mxu0 %v546
      %815 = vmatpush1.bf16.msra.mxu0 %v545
      %816 = vmatprep.subr.bf16.mxu0 0
      %817 = vmatpush2.bf16.msra.mxu0 0
      %818 = vmatprep.subr.bf16.mxu0 0
      %819 = vmatpush2.bf16.msra.mxu0 0
      %820 = vmatprep.subr.bf16.mxu0 0
      %821 = vmatpush2.bf16.msra.mxu0 0
      %822 = vmatprep.subr.bf16.mxu0 0
      %823 = vmatpush2.bf16.msra.mxu0 0
      %824 = vmatprep.subr.bf16.mxu0 0
      %825 = vmatpush2.bf16.msra.mxu0 0
      %826 = vmatprep.subr.bf16.mxu0 0
      %827 = vmatpush2.bf16.msra.mxu0 0
      %828 = vmatprep.subr.bf16.mxu0 0
      %829 = vmatpush2.bf16.msra.mxu0 0
      %830 = vmatprep.subr.bf16.mxu0 0
      %831 = vmatpush2.bf16.msra.mxu0 0
      %832 = vmatprep.mubr.bf16.mxu0 0
      %833 = vmatmul.mubr.bf16.gmra.mxu0 %v415
      %v834 = vpop.f32.mrf.mxu0
      %v835 = vadd.f32 %v342, %v834
      %v836 = vpop.f32.mrf.mxu0
      %v837 = vadd.f32 %v346, %v836
      %v838 = vpop.f32.mrf.mxu0
      %v839 = vadd.f32 %v342, %v838
      %v840 = vpop.f32.mrf.mxu0
      %v841 = vadd.f32 %v346, %v840
      %842 = vmatprep.mubr.bf16.mxu0 0
      %843 = vmatmul.mubr.bf16.gmra.mxu0 %v416
      %v844 = vpop.f32.mrf.mxu0
      %v845 = vadd.f32 %v342, %v844
      %v846 = vpop.f32.mrf.mxu0
      %v847 = vadd.f32 %v346, %v846
      %v848 = vpop.f32.mrf.mxu0
      %v849 = vadd.f32 %v342, %v848
      %v850 = vpop.f32.mrf.mxu0
      %v851 = vadd.f32 %v346, %v850
      %852 = vmatprep.mubr.bf16.mxu0 0
      %853 = vmatmul.mubr.bf16.gmra.mxu0 %v417
      %v854 = vpop.f32.mrf.mxu0
      %v855 = vadd.f32 %v342, %v854
      %v856 = vpop.f32.mrf.mxu0
      %v857 = vadd.f32 %v346, %v856
      %v858 = vpop.f32.mrf.mxu0
      %v859 = vadd.f32 %v342, %v858
      %v860 = vpop.f32.mrf.mxu0
      %v861 = vadd.f32 %v346, %v860
      %862 = vmatprep.mubr.bf16.mxu0 0
      %863 = vmatmul.mubr.bf16.gmra.mxu0 %v418
      %v864 = vpop.f32.mrf.mxu0
      %v865 = vadd.f32 %v342, %v864
      %v866 = vpop.f32.mrf.mxu0
      %v867 = vadd.f32 %v346, %v866
      %v868 = vpop.f32.mrf.mxu0
      %v869 = vadd.f32 %v342, %v868
      %v870 = vpop.f32.mrf.mxu0
      %v871 = vadd.f32 %v346, %v870
      %872 = vmatprep.mubr.bf16.mxu0 0
      %873 = vmatmul.mubr.bf16.gmra.mxu0 %v419
      %v874 = vpop.f32.mrf.mxu0
      %v875 = vadd.f32 %v342, %v874
      %v876 = vpop.f32.mrf.mxu0
      %v877 = vadd.f32 %v346, %v876
      %v878 = vpop.f32.mrf.mxu0
      %v879 = vadd.f32 %v342, %v878
      %v880 = vpop.f32.mrf.mxu0
      %v881 = vadd.f32 %v346, %v880
      %882 = vmatprep.mubr.bf16.mxu0 0
      %883 = vmatmul.mubr.bf16.gmra.mxu0 %v420
      %v884 = vpop.f32.mrf.mxu0
      %v885 = vadd.f32 %v342, %v884
      %v886 = vpop.f32.mrf.mxu0
      %v887 = vadd.f32 %v346, %v886
      %v888 = vpop.f32.mrf.mxu0
      %v889 = vadd.f32 %v342, %v888
      %v890 = vpop.f32.mrf.mxu0
      %v891 = vadd.f32 %v346, %v890
      %892 = vmatprep.mubr.bf16.mxu0 0
      %893 = vmatmul.mubr.bf16.gmra.mxu0 %v421
      %v894 = vpop.f32.mrf.mxu0
      %v895 = vadd.f32 %v342, %v894
      %v896 = vpop.f32.mrf.mxu0
      %v897 = vadd.f32 %v346, %v896
      %v898 = vpop.f32.mrf.mxu0
      %v899 = vadd.f32 %v342, %v898
      %v900 = vpop.f32.mrf.mxu0
      %v901 = vadd.f32 %v346, %v900
      %902 = vmatprep.mubr.bf16.mxu0 0
      %903 = vmatmul.mubr.bf16.gmra.mxu0 %v422
      %v904 = vpop.f32.mrf.mxu0
      %v905 = vadd.f32 %v342, %v904
      %v906 = vpop.f32.mrf.mxu0
      %v907 = vadd.f32 %v346, %v906
      %v908 = vpop.f32.mrf.mxu0
      %v909 = vadd.f32 %v342, %v908
      %v910 = vpop.f32.mrf.mxu0
      %v911 = vadd.f32 %v346, %v910
      %912 = vmatprep.mubr.bf16.mxu0 0
      %913 = vmatmul.mubr.bf16.gmra.mxu0 %v423
      %v914 = vpop.f32.mrf.mxu0
      %v915 = vadd.f32 %v342, %v914
      %v916 = vpop.f32.mrf.mxu0
      %v917 = vadd.f32 %v346, %v916
      %v918 = vpop.f32.mrf.mxu0
      %v919 = vadd.f32 %v342, %v918
      %v920 = vpop.f32.mrf.mxu0
      %v921 = vadd.f32 %v346, %v920
      %922 = vmatprep.mubr.bf16.mxu0 0
      %923 = vmatmul.mubr.bf16.gmra.mxu0 %v424
      %v924 = vpop.f32.mrf.mxu0
      %v925 = vadd.f32 %v342, %v924
      %v926 = vpop.f32.mrf.mxu0
      %v927 = vadd.f32 %v346, %v926
      %v928 = vpop.f32.mrf.mxu0
      %v929 = vadd.f32 %v342, %v928
      %v930 = vpop.f32.mrf.mxu0
      %v931 = vadd.f32 %v346, %v930
      %932 = vmatprep.mubr.bf16.mxu0 0
      %933 = vmatmul.mubr.bf16.gmra.mxu0 %v425
      %v934 = vpop.f32.mrf.mxu0
      %v935 = vadd.f32 %v342, %v934
      %v936 = vpop.f32.mrf.mxu0
      %v937 = vadd.f32 %v346, %v936
      %v938 = vpop.f32.mrf.mxu0
      %v939 = vadd.f32 %v342, %v938
      %v940 = vpop.f32.mrf.mxu0
      %v941 = vadd.f32 %v346, %v940
      %942 = vmatprep.mubr.bf16.mxu0 0
      %943 = vmatmul.mubr.bf16.gmra.mxu0 %v426
      %v944 = vpop.f32.mrf.mxu0
      %v945 = vadd.f32 %v342, %v944
      %v946 = vpop.f32.mrf.mxu0
      %v947 = vadd.f32 %v346, %v946
      %v948 = vpop.f32.mrf.mxu0
      %v949 = vadd.f32 %v342, %v948
      %v950 = vpop.f32.mrf.mxu0
      %v951 = vadd.f32 %v346, %v950
      %952 = vmatprep.mubr.bf16.mxu0 0
      %953 = vmatmul.mubr.bf16.gmra.mxu0 %v427
      %v954 = vpop.f32.mrf.mxu0
      %v955 = vadd.f32 %v342, %v954
      %v956 = vpop.f32.mrf.mxu0
      %v957 = vadd.f32 %v346, %v956
      %v958 = vpop.f32.mrf.mxu0
      %v959 = vadd.f32 %v342, %v958
      %v960 = vpop.f32.mrf.mxu0
      %v961 = vadd.f32 %v346, %v960
      %962 = vmatprep.mubr.bf16.mxu0 0
      %963 = vmatmul.mubr.bf16.gmra.mxu0 %v428
      %v964 = vpop.f32.mrf.mxu0
      %v965 = vadd.f32 %v342, %v964
      %v966 = vpop.f32.mrf.mxu0
      %v967 = vadd.f32 %v346, %v966
      %v968 = vpop.f32.mrf.mxu0
      %v969 = vadd.f32 %v342, %v968
      %v970 = vpop.f32.mrf.mxu0
      %v971 = vadd.f32 %v346, %v970
      %972 = vmatprep.mubr.bf16.mxu0 0
      %973 = vmatmul.mubr.bf16.gmra.mxu0 %v429
      %v974 = vpop.f32.mrf.mxu0
      %v975 = vadd.f32 %v342, %v974
      %v976 = vpop.f32.mrf.mxu0
      %v977 = vadd.f32 %v346, %v976
      %v978 = vpop.f32.mrf.mxu0
      %v979 = vadd.f32 %v342, %v978
      %v980 = vpop.f32.mrf.mxu0
      %v981 = vadd.f32 %v346, %v980
      %982 = vmatprep.mubr.bf16.mxu0 0
      %983 = vmatmul.mubr.bf16.gmra.mxu0 %v430
      %v984 = vpop.f32.mrf.mxu0
      %v985 = vadd.f32 %v342, %v984
      %v986 = vpop.f32.mrf.mxu0
      %v987 = vadd.f32 %v346, %v986
      %v988 = vpop.f32.mrf.mxu0
      %v989 = vadd.f32 %v342, %v988
      %v990 = vpop.f32.mrf.mxu0
      %v991 = vadd.f32 %v346, %v990
      %992 = vdwg.mxu0
      %v993 = vmax.f32 %v642, 0.0
      %v994 = vmax.f32 %v644, 0.0
      %v995 = vmax.f32 %v835, 0.0
      %v996 = vmax.f32 %v837, 0.0
      %v997 = vmax.f32 %v646, 0.0
      %v998 = vmax.f32 %v648, 0.0
      %v999 = vmax.f32 %v839, 0.0
      %v1000 = vmax.f32 %v841, 0.0
      %v1001 = vmax.f32 %v652, 0.0
      %v1002 = vmax.f32 %v654, 0.0
      %v1003 = vmax.f32 %v845, 0.0
      %v1004 = vmax.f32 %v847, 0.0
      %v1005 = vmax.f32 %v656, 0.0
      %v1006 = vmax.f32 %v658, 0.0
      %v1007 = vmax.f32 %v849, 0.0
      %v1008 = vmax.f32 %v851, 0.0
      %v1009 = vmax.f32 %v662, 0.0
      %v1010 = vmax.f32 %v664, 0.0
      %v1011 = vmax.f32 %v855, 0.0
      %v1012 = vmax.f32 %v857, 0.0
      %v1013 = vmax.f32 %v666, 0.0
      %v1014 = vmax.f32 %v668, 0.0
      %v1015 = vmax.f32 %v859, 0.0
      %v1016 = vmax.f32 %v861, 0.0
      %v1017 = vmax.f32 %v672, 0.0
      %v1018 = vmax.f32 %v674, 0.0
      %v1019 = vmax.f32 %v865, 0.0
      %v1020 = vmax.f32 %v867, 0.0
      %v1021 = vmax.f32 %v676, 0.0
      %v1022 = vmax.f32 %v678, 0.0
      %v1023 = vmax.f32 %v869, 0.0
      %v1024 = vmax.f32 %v871, 0.0
      %v1025 = vmax.f32 %v682, 0.0
      %v1026 = vmax.f32 %v684, 0.0
      %v1027 = vmax.f32 %v875, 0.0
      %v1028 = vmax.f32 %v877, 0.0
      %v1029 = vmax.f32 %v686, 0.0
      %v1030 = vmax.f32 %v688, 0.0
      %v1031 = vmax.f32 %v879, 0.0
      %v1032 = vmax.f32 %v881, 0.0
      %v1033 = vmax.f32 %v692, 0.0
      %v1034 = vmax.f32 %v694, 0.0
      %v1035 = vmax.f32 %v885, 0.0
      %v1036 = vmax.f32 %v887, 0.0
      %v1037 = vmax.f32 %v696, 0.0
      %v1038 = vmax.f32 %v698, 0.0
      %v1039 = vmax.f32 %v889, 0.0
      %v1040 = vmax.f32 %v891, 0.0
      %v1041 = vmax.f32 %v702, 0.0
      %v1042 = vmax.f32 %v704, 0.0
      %v1043 = vmax.f32 %v895, 0.0
      %v1044 = vmax.f32 %v897, 0.0
      %v1045 = vmax.f32 %v706, 0.0
      %v1046 = vmax.f32 %v708, 0.0
      %v1047 = vmax.f32 %v899, 0.0
      %v1048 = vmax.f32 %v901, 0.0
      %v1049 = vmax.f32 %v712, 0.0
      %v1050 = vmax.f32 %v714, 0.0
      %v1051 = vmax.f32 %v905, 0.0
      %v1052 = vmax.f32 %v907, 0.0
      %v1053 = vmax.f32 %v716, 0.0
      %v1054 = vmax.f32 %v718, 0.0
      %v1055 = vmax.f32 %v909, 0.0
      %v1056 = vmax.f32 %v911, 0.0
      %v1057 = vmax.f32 %v722, 0.0
      %v1058 = vmax.f32 %v724, 0.0
      %v1059 = vmax.f32 %v915, 0.0
      %v1060 = vmax.f32 %v917, 0.0
      %v1061 = vmax.f32 %v726, 0.0
      %v1062 = vmax.f32 %v728, 0.0
      %v1063 = vmax.f32 %v919, 0.0
      %v1064 = vmax.f32 %v921, 0.0
      %v1065 = vmax.f32 %v732, 0.0
      %v1066 = vmax.f32 %v734, 0.0
      %v1067 = vmax.f32 %v925, 0.0
      %v1068 = vmax.f32 %v927, 0.0
      %v1069 = vmax.f32 %v736, 0.0
      %v1070 = vmax.f32 %v738, 0.0
      %v1071 = vmax.f32 %v929, 0.0
      %v1072 = vmax.f32 %v931, 0.0
      %v1073 = vmax.f32 %v742, 0.0
      %v1074 = vmax.f32 %v744, 0.0
      %v1075 = vmax.f32 %v935, 0.0
      %v1076 = vmax.f32 %v937, 0.0
      %v1077 = vmax.f32 %v746, 0.0
      %v1078 = vmax.f32 %v748, 0.0
      %v1079 = vmax.f32 %v939, 0.0
      %v1080 = vmax.f32 %v941, 0.0
      %v1081 = vmax.f32 %v752, 0.0
      %v1082 = vmax.f32 %v754, 0.0
      %v1083 = vmax.f32 %v945, 0.0
      %v1084 = vmax.f32 %v947, 0.0
      %v1085 = vmax.f32 %v756, 0.0
      %v1086 = vmax.f32 %v758, 0.0
      %v1087 = vmax.f32 %v949, 0.0
      %v1088 = vmax.f32 %v951, 0.0
      %v1089 = vmax.f32 %v762, 0.0
      %v1090 = vmax.f32 %v764, 0.0
      %v1091 = vmax.f32 %v955, 0.0
      %v1092 = vmax.f32 %v957, 0.0
      %v1093 = vmax.f32 %v766, 0.0
      %v1094 = vmax.f32 %v768, 0.0
      %v1095 = vmax.f32 %v959, 0.0
      %v1096 = vmax.f32 %v961, 0.0
      %v1097 = vmax.f32 %v772, 0.0
      %v1098 = vmax.f32 %v774, 0.0
      %v1099 = vmax.f32 %v965, 0.0
      %v1100 = vmax.f32 %v967, 0.0
      %v1101 = vmax.f32 %v776, 0.0
      %v1102 = vmax.f32 %v778, 0.0
      %v1103 = vmax.f32 %v969, 0.0
      %v1104 = vmax.f32 %v971, 0.0
      %v1105 = vmax.f32 %v782, 0.0
      %v1106 = vmax.f32 %v784, 0.0
      %v1107 = vmax.f32 %v975, 0.0
      %v1108 = vmax.f32 %v977, 0.0
      %v1109 = vmax.f32 %v786, 0.0
      %v1110 = vmax.f32 %v788, 0.0
      %v1111 = vmax.f32 %v979, 0.0
      %v1112 = vmax.f32 %v981, 0.0
      %v1113 = vmax.f32 %v792, 0.0
      %v1114 = vmax.f32 %v794, 0.0
      %v1115 = vmax.f32 %v985, 0.0
      %v1116 = vmax.f32 %v987, 0.0
      %v1117 = vmax.f32 %v796, 0.0
      %v1118 = vmax.f32 %v798, 0.0
      %v1119 = vmax.f32 %v989, 0.0
      %v1120 = vmax.f32 %v991, 0.0
      %v1121 = vpack.c.bf16 %v997, %v993
      %v1122 = vpack.c.bf16 %v998, %v994
      %v1123 = vpack.c.bf16 %v999, %v995
      %v1124 = vpack.c.bf16 %v1000, %v996
      %v1125 = vpack.c.bf16 %v1005, %v1001
      %v1126 = vpack.c.bf16 %v1006, %v1002
      %v1127 = vpack.c.bf16 %v1007, %v1003
      %v1128 = vpack.c.bf16 %v1008, %v1004
      %v1129 = vpack.c.bf16 %v1013, %v1009
      %v1130 = vpack.c.bf16 %v1014, %v1010
      %v1131 = vpack.c.bf16 %v1015, %v1011
      %v1132 = vpack.c.bf16 %v1016, %v1012
      %v1133 = vpack.c.bf16 %v1021, %v1017
      %v1134 = vpack.c.bf16 %v1022, %v1018
      %v1135 = vpack.c.bf16 %v1023, %v1019
      %v1136 = vpack.c.bf16 %v1024, %v1020
      %v1137 = vpack.c.bf16 %v1029, %v1025
      %v1138 = vpack.c.bf16 %v1030, %v1026
      %v1139 = vpack.c.bf16 %v1031, %v1027
      %v1140 = vpack.c.bf16 %v1032, %v1028
      %v1141 = vpack.c.bf16 %v1037, %v1033
      %v1142 = vpack.c.bf16 %v1038, %v1034
      %v1143 = vpack.c.bf16 %v1039, %v1035
      %v1144 = vpack.c.bf16 %v1040, %v1036
      %v1145 = vpack.c.bf16 %v1045, %v1041
      %v1146 = vpack.c.bf16 %v1046, %v1042
      %v1147 = vpack.c.bf16 %v1047, %v1043
      %v1148 = vpack.c.bf16 %v1048, %v1044
      %v1149 = vpack.c.bf16 %v1053, %v1049
      %v1150 = vpack.c.bf16 %v1054, %v1050
      %v1151 = vpack.c.bf16 %v1055, %v1051
      %v1152 = vpack.c.bf16 %v1056, %v1052
      %v1153 = vpack.c.bf16 %v1061, %v1057
      %v1154 = vpack.c.bf16 %v1062, %v1058
      %v1155 = vpack.c.bf16 %v1063, %v1059
      %v1156 = vpack.c.bf16 %v1064, %v1060
      %v1157 = vpack.c.bf16 %v1069, %v1065
      %v1158 = vpack.c.bf16 %v1070, %v1066
      %v1159 = vpack.c.bf16 %v1071, %v1067
      %v1160 = vpack.c.bf16 %v1072, %v1068
      %v1161 = vpack.c.bf16 %v1077, %v1073
      %v1162 = vpack.c.bf16 %v1078, %v1074
      %v1163 = vpack.c.bf16 %v1079, %v1075
      %v1164 = vpack.c.bf16 %v1080, %v1076
      %v1165 = vpack.c.bf16 %v1085, %v1081
      %v1166 = vpack.c.bf16 %v1086, %v1082
      %v1167 = vpack.c.bf16 %v1087, %v1083
      %v1168 = vpack.c.bf16 %v1088, %v1084
      %v1169 = vpack.c.bf16 %v1093, %v1089
      %v1170 = vpack.c.bf16 %v1094, %v1090
      %v1171 = vpack.c.bf16 %v1095, %v1091
      %v1172 = vpack.c.bf16 %v1096, %v1092
      %v1173 = vpack.c.bf16 %v1101, %v1097
      %v1174 = vpack.c.bf16 %v1102, %v1098
      %v1175 = vpack.c.bf16 %v1103, %v1099
      %v1176 = vpack.c.bf16 %v1104, %v1100
      %v1177 = vpack.c.bf16 %v1109, %v1105
      %v1178 = vpack.c.bf16 %v1110, %v1106
      %v1179 = vpack.c.bf16 %v1111, %v1107
      %v1180 = vpack.c.bf16 %v1112, %v1108
      %v1181 = vpack.c.bf16 %v1117, %v1113
      %v1182 = vpack.c.bf16 %v1118, %v1114
      %v1183 = vpack.c.bf16 %v1119, %v1115
      %v1184 = vpack.c.bf16 %v1120, %v1116
      %v1185 = vld [vmem:[%s3] sm:$0xf]
      %v1186 = vld [vmem:[%s3 + $0x4] sm:$0xf]
      %v1187 = vld [vmem:[%s3 + $0x8] sm:$0xf]
      %v1188 = vld [vmem:[%s3 + $0xc] sm:$0xf]
      %v1189 = vld [vmem:[%s3 + $0x10] sm:$0xf]
      %v1190 = vld [vmem:[%s3 + $0x14] sm:$0xf]
      %v1191 = vld [vmem:[%s3 + $0x18] sm:$0xf]
      %v1192 = vld [vmem:[%s3 + $0x1c] sm:$0xf]
      %v1193 = vld [vmem:[%s3 + $0x20] sm:$0xf]
      %v1194 = vld [vmem:[%s3 + $0x24] sm:$0xf]
      %v1195 = vld [vmem:[%s3 + $0x28] sm:$0xf]
      %v1196 = vld [vmem:[%s3 + $0x2c] sm:$0xf]
      %v1197 = vld [vmem:[%s3 + $0x30] sm:$0xf]
      %v1198 = vld [vmem:[%s3 + $0x34] sm:$0xf]
      %v1199 = vld [vmem:[%s3 + $0x38] sm:$0xf]
      %v1200 = vld [vmem:[%s3 + $0x3c] sm:$0xf]
      %v1201 = vld [vmem:[%s3 + $0x40] sm:$0xf]
      %v1202 = vld [vmem:[%s3 + $0x44] sm:$0xf]
      %v1203 = vld [vmem:[%s3 + $0x48] sm:$0xf]
      %v1204 = vld [vmem:[%s3 + $0x4c] sm:$0xf]
      %v1205 = vld [vmem:[%s3 + $0x50] sm:$0xf]
      %v1206 = vld [vmem:[%s3 + $0x54] sm:$0xf]
      %v1207 = vld [vmem:[%s3 + $0x58] sm:$0xf]
      %v1208 = vld [vmem:[%s3 + $0x5c] sm:$0xf]
      %v1209 = vld [vmem:[%s3 + $0x60] sm:$0xf]
      %v1210 = vld [vmem:[%s3 + $0x64] sm:$0xf]
      %v1211 = vld [vmem:[%s3 + $0x68] sm:$0xf]
      %v1212 = vld [vmem:[%s3 + $0x6c] sm:$0xf]
      %v1213 = vld [vmem:[%s3 + $0x70] sm:$0xf]
      %v1214 = vld [vmem:[%s3 + $0x74] sm:$0xf]
      %v1215 = vld [vmem:[%s3 + $0x78] sm:$0xf]
      %v1216 = vld [vmem:[%s3 + $0x7c] sm:$0xf]
      %v1217 = vld [vmem:[%s3 + $0x80] sm:$0xf]
      %v1218 = vld [vmem:[%s3 + $0x84] sm:$0xf]
      %v1219 = vld [vmem:[%s3 + $0x88] sm:$0xf]
      %v1220 = vld [vmem:[%s3 + $0x8c] sm:$0xf]
      %v1221 = vld [vmem:[%s3 + $0x90] sm:$0xf]
      %v1222 = vld [vmem:[%s3 + $0x94] sm:$0xf]
      %v1223 = vld [vmem:[%s3 + $0x98] sm:$0xf]
      %v1224 = vld [vmem:[%s3 + $0x9c] sm:$0xf]
      %v1225 = vld [vmem:[%s3 + $0xa0] sm:$0xf]
      %v1226 = vld [vmem:[%s3 + $0xa4] sm:$0xf]
      %v1227 = vld [vmem:[%s3 + $0xa8] sm:$0xf]
      %v1228 = vld [vmem:[%s3 + $0xac] sm:$0xf]
      %v1229 = vld [vmem:[%s3 + $0xb0] sm:$0xf]
      %v1230 = vld [vmem:[%s3 + $0xb4] sm:$0xf]
      %v1231 = vld [vmem:[%s3 + $0xb8] sm:$0xf]
      %v1232 = vld [vmem:[%s3 + $0xbc] sm:$0xf]
      %v1233 = vld [vmem:[%s3 + $0xc0] sm:$0xf]
      %v1234 = vld [vmem:[%s3 + $0xc4] sm:$0xf]
      %v1235 = vld [vmem:[%s3 + $0xc8] sm:$0xf]
      %v1236 = vld [vmem:[%s3 + $0xcc] sm:$0xf]
      %v1237 = vld [vmem:[%s3 + $0xd0] sm:$0xf]
      %v1238 = vld [vmem:[%s3 + $0xd4] sm:$0xf]
      %v1239 = vld [vmem:[%s3 + $0xd8] sm:$0xf]
      %v1240 = vld [vmem:[%s3 + $0xdc] sm:$0xf]
      %v1241 = vld [vmem:[%s3 + $0xe0] sm:$0xf]
      %v1242 = vld [vmem:[%s3 + $0xe4] sm:$0xf]
      %v1243 = vld [vmem:[%s3 + $0xe8] sm:$0xf]
      %v1244 = vld [vmem:[%s3 + $0xec] sm:$0xf]
      %v1245 = vld [vmem:[%s3 + $0xf0] sm:$0xf]
      %v1246 = vld [vmem:[%s3 + $0xf4] sm:$0xf]
      %v1247 = vld [vmem:[%s3 + $0xf8] sm:$0xf]
      %v1248 = vld [vmem:[%s3 + $0xfc] sm:$0xf]
      %v1249 = vld [vmem:[%s4] sm:$0x1]
      %v1251 = vlaneseq
      %v1252 = vshrl.u32 %v1251, 7
      %v1253 = vsub.s32 0, %v1252
      %v1254 = vrot.slane %v1249, %v1253
      %v1320 = vunpack.c.l.b16 %v1185
      %v1321 = vunpack.c.l.b16 %v1186
      %v1322 = vunpack.c.l.b16 %v1187
      %v1323 = vunpack.c.l.b16 %v1188
      %v1324 = vunpack.c.l.b16 %v1189
      %v1325 = vunpack.c.l.b16 %v1190
      %v1326 = vunpack.c.l.b16 %v1191
      %v1327 = vunpack.c.l.b16 %v1192
      %v1328 = vunpack.c.l.b16 %v1193
      %v1329 = vunpack.c.l.b16 %v1194
      %v1330 = vunpack.c.l.b16 %v1195
      %v1331 = vunpack.c.l.b16 %v1196
      %v1332 = vunpack.c.l.b16 %v1197
      %v1333 = vunpack.c.l.b16 %v1198
      %v1334 = vunpack.c.l.b16 %v1199
      %v1335 = vunpack.c.l.b16 %v1200
      %v1336 = vunpack.c.l.b16 %v1201
      %v1337 = vunpack.c.l.b16 %v1202
      %v1338 = vunpack.c.l.b16 %v1203
      %v1339 = vunpack.c.l.b16 %v1204
      %v1340 = vunpack.c.l.b16 %v1205
      %v1341 = vunpack.c.l.b16 %v1206
      %v1342 = vunpack.c.l.b16 %v1207
      %v1343 = vunpack.c.l.b16 %v1208
      %v1344 = vunpack.c.l.b16 %v1209
      %v1345 = vunpack.c.l.b16 %v1210
      %v1346 = vunpack.c.l.b16 %v1211
      %v1347 = vunpack.c.l.b16 %v1212
      %v1348 = vunpack.c.l.b16 %v1213
      %v1349 = vunpack.c.l.b16 %v1214
      %v1350 = vunpack.c.l.b16 %v1215
      %v1351 = vunpack.c.l.b16 %v1216
      %v1352 = vunpack.c.l.b16 %v1217
      %v1353 = vunpack.c.l.b16 %v1218
      %v1354 = vunpack.c.l.b16 %v1219
      %v1355 = vunpack.c.l.b16 %v1220
      %v1356 = vunpack.c.l.b16 %v1221
      %v1357 = vunpack.c.l.b16 %v1222
      %v1358 = vunpack.c.l.b16 %v1223
      %v1359 = vunpack.c.l.b16 %v1224
      %v1360 = vunpack.c.l.b16 %v1225
      %v1361 = vunpack.c.l.b16 %v1226
      %v1362 = vunpack.c.l.b16 %v1227
      %v1363 = vunpack.c.l.b16 %v1228
      %v1364 = vunpack.c.l.b16 %v1229
      %v1365 = vunpack.c.l.b16 %v1230
      %v1366 = vunpack.c.l.b16 %v1231
      %v1367 = vunpack.c.l.b16 %v1232
      %v1368 = vunpack.c.l.b16 %v1233
      %v1369 = vunpack.c.l.b16 %v1234
      %v1370 = vunpack.c.l.b16 %v1235
      %v1371 = vunpack.c.l.b16 %v1236
      %v1372 = vunpack.c.l.b16 %v1237
      %v1373 = vunpack.c.l.b16 %v1238
      %v1374 = vunpack.c.l.b16 %v1239
      %v1375 = vunpack.c.l.b16 %v1240
      %v1376 = vunpack.c.l.b16 %v1241
      %v1377 = vunpack.c.l.b16 %v1242
      %v1378 = vunpack.c.l.b16 %v1243
      %v1379 = vunpack.c.l.b16 %v1244
      %v1380 = vunpack.c.l.b16 %v1245
      %v1381 = vunpack.c.l.b16 %v1246
      %v1382 = vunpack.c.l.b16 %v1247
      %v1383 = vunpack.c.l.b16 %v1248
      %v1384 = vpack.c.b16 %v1321, %v1320
      %v1385 = vpack.c.b16 %v1323, %v1322
      %v1386 = vpack.c.b16 %v1325, %v1324
      %v1387 = vpack.c.b16 %v1327, %v1326
      %v1388 = vpack.c.b16 %v1329, %v1328
      %v1389 = vpack.c.b16 %v1331, %v1330
      %v1390 = vpack.c.b16 %v1333, %v1332
      %v1391 = vpack.c.b16 %v1335, %v1334
      %v1392 = vpack.c.b16 %v1337, %v1336
      %v1393 = vpack.c.b16 %v1339, %v1338
      %v1394 = vpack.c.b16 %v1341, %v1340
      %v1395 = vpack.c.b16 %v1343, %v1342
      %v1396 = vpack.c.b16 %v1345, %v1344
      %v1397 = vpack.c.b16 %v1347, %v1346
      %v1398 = vpack.c.b16 %v1349, %v1348
      %v1399 = vpack.c.b16 %v1351, %v1350
      %v1400 = vpack.c.b16 %v1353, %v1352
      %v1401 = vpack.c.b16 %v1355, %v1354
      %v1402 = vpack.c.b16 %v1357, %v1356
      %v1403 = vpack.c.b16 %v1359, %v1358
      %v1404 = vpack.c.b16 %v1361, %v1360
      %v1405 = vpack.c.b16 %v1363, %v1362
      %v1406 = vpack.c.b16 %v1365, %v1364
      %v1407 = vpack.c.b16 %v1367, %v1366
      %v1408 = vpack.c.b16 %v1369, %v1368
      %v1409 = vpack.c.b16 %v1371, %v1370
      %v1410 = vpack.c.b16 %v1373, %v1372
      %v1411 = vpack.c.b16 %v1375, %v1374
      %v1412 = vpack.c.b16 %v1377, %v1376
      %v1413 = vpack.c.b16 %v1379, %v1378
      %v1414 = vpack.c.b16 %v1381, %v1380
      %v1415 = vpack.c.b16 %v1383, %v1382
      %1448 = vmatprep.subr.bf16.mxu0 0
      %1449 = vmatpush1.bf16.msra.mxu0 %v1391
      %1450 = vmatprep.subr.bf16.mxu0 0
      %1451 = vmatpush1.bf16.msra.mxu0 %v1390
      %1452 = vmatprep.subr.bf16.mxu0 0
      %1453 = vmatpush1.bf16.msra.mxu0 %v1389
      %1454 = vmatprep.subr.bf16.mxu0 0
      %1455 = vmatpush1.bf16.msra.mxu0 %v1388
      %1456 = vmatprep.subr.bf16.mxu0 0
      %1457 = vmatpush1.bf16.msra.mxu0 %v1387
      %1458 = vmatprep.subr.bf16.mxu0 0
      %1459 = vmatpush1.bf16.msra.mxu0 %v1386
      %1460 = vmatprep.subr.bf16.mxu0 0
      %1461 = vmatpush1.bf16.msra.mxu0 %v1385
      %1462 = vmatprep.subr.bf16.mxu0 0
      %1463 = vmatpush1.bf16.msra.mxu0 %v1384
      %1464 = vmatprep.subr.bf16.mxu0 0
      %1465 = vmatpush2.bf16.msra.mxu0 %v1399
      %1466 = vmatprep.subr.bf16.mxu0 0
      %1467 = vmatpush2.bf16.msra.mxu0 %v1398
      %1468 = vmatprep.subr.bf16.mxu0 0
      %1469 = vmatpush2.bf16.msra.mxu0 %v1397
      %1470 = vmatprep.subr.bf16.mxu0 0
      %1471 = vmatpush2.bf16.msra.mxu0 %v1396
      %1472 = vmatprep.subr.bf16.mxu0 0
      %1473 = vmatpush2.bf16.msra.mxu0 %v1395
      %1474 = vmatprep.subr.bf16.mxu0 0
      %1475 = vmatpush2.bf16.msra.mxu0 %v1394
      %1476 = vmatprep.subr.bf16.mxu0 0
      %1477 = vmatpush2.bf16.msra.mxu0 %v1393
      %1478 = vmatprep.subr.bf16.mxu0 0
      %1479 = vmatpush2.bf16.msra.mxu0 %v1392
      %1480 = vmatprep.mubr.bf16.mxu0 %v1122
      %1481 = vmatmul.mubr.bf16.gmra.mxu0 %v1121
      %v1482 = vpop.f32.mrf.mxu0
      %v1483 = vadd.f32 %v1254, %v1482
      %v1484 = vpop.f32.mrf.mxu0
      %v1485 = vpop.f32.mrf.mxu0
      %v1486 = vadd.f32 %v1254, %v1485
      %v1487 = vpop.f32.mrf.mxu0
      %1488 = vmatprep.mubr.bf16.mxu0 %v1126
      %1489 = vmatmul.mubr.bf16.gmra.mxu0 %v1125
      %v1490 = vpop.f32.mrf.mxu0
      %v1491 = vadd.f32 %v1254, %v1490
      %v1492 = vpop.f32.mrf.mxu0
      %v1493 = vpop.f32.mrf.mxu0
      %v1494 = vadd.f32 %v1254, %v1493
      %v1495 = vpop.f32.mrf.mxu0
      %1496 = vmatprep.mubr.bf16.mxu0 %v1130
      %1497 = vmatmul.mubr.bf16.gmra.mxu0 %v1129
      %v1498 = vpop.f32.mrf.mxu0
      %v1499 = vadd.f32 %v1254, %v1498
      %v1500 = vpop.f32.mrf.mxu0
      %v1501 = vpop.f32.mrf.mxu0
      %v1502 = vadd.f32 %v1254, %v1501
      %v1503 = vpop.f32.mrf.mxu0
      %1504 = vmatprep.mubr.bf16.mxu0 %v1134
      %1505 = vmatmul.mubr.bf16.gmra.mxu0 %v1133
      %v1506 = vpop.f32.mrf.mxu0
      %v1507 = vadd.f32 %v1254, %v1506
      %v1508 = vpop.f32.mrf.mxu0
      %v1509 = vpop.f32.mrf.mxu0
      %v1510 = vadd.f32 %v1254, %v1509
      %v1511 = vpop.f32.mrf.mxu0
      %1512 = vmatprep.mubr.bf16.mxu0 %v1138
      %1513 = vmatmul.mubr.bf16.gmra.mxu0 %v1137
      %v1514 = vpop.f32.mrf.mxu0
      %v1515 = vadd.f32 %v1254, %v1514
      %v1516 = vpop.f32.mrf.mxu0
      %v1517 = vpop.f32.mrf.mxu0
      %v1518 = vadd.f32 %v1254, %v1517
      %v1519 = vpop.f32.mrf.mxu0
      %1520 = vmatprep.mubr.bf16.mxu0 %v1142
      %1521 = vmatmul.mubr.bf16.gmra.mxu0 %v1141
      %v1522 = vpop.f32.mrf.mxu0
      %v1523 = vadd.f32 %v1254, %v1522
      %v1524 = vpop.f32.mrf.mxu0
      %v1525 = vpop.f32.mrf.mxu0
      %v1526 = vadd.f32 %v1254, %v1525
      %v1527 = vpop.f32.mrf.mxu0
      %1528 = vmatprep.mubr.bf16.mxu0 %v1146
      %1529 = vmatmul.mubr.bf16.gmra.mxu0 %v1145
      %v1530 = vpop.f32.mrf.mxu0
      %v1531 = vadd.f32 %v1254, %v1530
      %v1532 = vpop.f32.mrf.mxu0
      %v1533 = vpop.f32.mrf.mxu0
      %v1534 = vadd.f32 %v1254, %v1533
      %v1535 = vpop.f32.mrf.mxu0
      %1536 = vmatprep.mubr.bf16.mxu0 %v1150
      %1537 = vmatmul.mubr.bf16.gmra.mxu0 %v1149
      %v1538 = vpop.f32.mrf.mxu0
      %v1539 = vadd.f32 %v1254, %v1538
      %v1540 = vpop.f32.mrf.mxu0
      %v1541 = vpop.f32.mrf.mxu0
      %v1542 = vadd.f32 %v1254, %v1541
      %v1543 = vpop.f32.mrf.mxu0
      %1544 = vmatprep.mubr.bf16.mxu0 %v1154
      %1545 = vmatmul.mubr.bf16.gmra.mxu0 %v1153
      %v1546 = vpop.f32.mrf.mxu0
      %v1547 = vadd.f32 %v1254, %v1546
      %v1548 = vpop.f32.mrf.mxu0
      %v1549 = vpop.f32.mrf.mxu0
      %v1550 = vadd.f32 %v1254, %v1549
      %v1551 = vpop.f32.mrf.mxu0
      %1552 = vmatprep.mubr.bf16.mxu0 %v1158
      %1553 = vmatmul.mubr.bf16.gmra.mxu0 %v1157
      %v1554 = vpop.f32.mrf.mxu0
      %v1555 = vadd.f32 %v1254, %v1554
      %v1556 = vpop.f32.mrf.mxu0
      %v1557 = vpop.f32.mrf.mxu0
      %v1558 = vadd.f32 %v1254, %v1557
      %v1559 = vpop.f32.mrf.mxu0
      %1560 = vmatprep.mubr.bf16.mxu0 %v1162
      %1561 = vmatmul.mubr.bf16.gmra.mxu0 %v1161
      %v1562 = vpop.f32.mrf.mxu0
      %v1563 = vadd.f32 %v1254, %v1562
      %v1564 = vpop.f32.mrf.mxu0
      %v1565 = vpop.f32.mrf.mxu0
      %v1566 = vadd.f32 %v1254, %v1565
      %v1567 = vpop.f32.mrf.mxu0
      %1568 = vmatprep.mubr.bf16.mxu0 %v1166
      %1569 = vmatmul.mubr.bf16.gmra.mxu0 %v1165
      %v1570 = vpop.f32.mrf.mxu0
      %v1571 = vadd.f32 %v1254, %v1570
      %v1572 = vpop.f32.mrf.mxu0
      %v1573 = vpop.f32.mrf.mxu0
      %v1574 = vadd.f32 %v1254, %v1573
      %v1575 = vpop.f32.mrf.mxu0
      %1576 = vmatprep.mubr.bf16.mxu0 %v1170
      %1577 = vmatmul.mubr.bf16.gmra.mxu0 %v1169
      %v1578 = vpop.f32.mrf.mxu0
      %v1579 = vadd.f32 %v1254, %v1578
      %v1580 = vpop.f32.mrf.mxu0
      %v1581 = vpop.f32.mrf.mxu0
      %v1582 = vadd.f32 %v1254, %v1581
      %v1583 = vpop.f32.mrf.mxu0
      %1584 = vmatprep.mubr.bf16.mxu0 %v1174
      %1585 = vmatmul.mubr.bf16.gmra.mxu0 %v1173
      %v1586 = vpop.f32.mrf.mxu0
      %v1587 = vadd.f32 %v1254, %v1586
      %v1588 = vpop.f32.mrf.mxu0
      %v1589 = vpop.f32.mrf.mxu0
      %v1590 = vadd.f32 %v1254, %v1589
      %v1591 = vpop.f32.mrf.mxu0
      %1592 = vmatprep.mubr.bf16.mxu0 %v1178
      %1593 = vmatmul.mubr.bf16.gmra.mxu0 %v1177
      %v1594 = vpop.f32.mrf.mxu0
      %v1595 = vadd.f32 %v1254, %v1594
      %v1596 = vpop.f32.mrf.mxu0
      %v1597 = vpop.f32.mrf.mxu0
      %v1598 = vadd.f32 %v1254, %v1597
      %v1599 = vpop.f32.mrf.mxu0
      %1600 = vmatprep.mubr.bf16.mxu0 %v1182
      %1601 = vmatmul.mubr.bf16.gmra.mxu0 %v1181
      %v1602 = vpop.f32.mrf.mxu0
      %v1603 = vadd.f32 %v1254, %v1602
      %v1604 = vpop.f32.mrf.mxu0
      %v1605 = vpop.f32.mrf.mxu0
      %v1606 = vadd.f32 %v1254, %v1605
      %v1607 = vpop.f32.mrf.mxu0
      %1608 = vdwg.mxu0
      %1609 = vmatprep.subr.bf16.mxu0 0
      %1610 = vmatpush1.bf16.msra.mxu0 %v1407
      %1611 = vmatprep.subr.bf16.mxu0 0
      %1612 = vmatpush1.bf16.msra.mxu0 %v1406
      %1613 = vmatprep.subr.bf16.mxu0 0
      %1614 = vmatpush1.bf16.msra.mxu0 %v1405
      %1615 = vmatprep.subr.bf16.mxu0 0
      %1616 = vmatpush1.bf16.msra.mxu0 %v1404
      %1617 = vmatprep.subr.bf16.mxu0 0
      %1618 = vmatpush1.bf16.msra.mxu0 %v1403
      %1619 = vmatprep.subr.bf16.mxu0 0
      %1620 = vmatpush1.bf16.msra.mxu0 %v1402
      %1621 = vmatprep.subr.bf16.mxu0 0
      %1622 = vmatpush1.bf16.msra.mxu0 %v1401
      %1623 = vmatprep.subr.bf16.mxu0 0
      %1624 = vmatpush1.bf16.msra.mxu0 %v1400
      %1625 = vmatprep.subr.bf16.mxu0 0
      %1626 = vmatpush2.bf16.msra.mxu0 %v1415
      %1627 = vmatprep.subr.bf16.mxu0 0
      %1628 = vmatpush2.bf16.msra.mxu0 %v1414
      %1629 = vmatprep.subr.bf16.mxu0 0
      %1630 = vmatpush2.bf16.msra.mxu0 %v1413
      %1631 = vmatprep.subr.bf16.mxu0 0
      %1632 = vmatpush2.bf16.msra.mxu0 %v1412
      %1633 = vmatprep.subr.bf16.mxu0 0
      %1634 = vmatpush2.bf16.msra.mxu0 %v1411
      %1635 = vmatprep.subr.bf16.mxu0 0
      %1636 = vmatpush2.bf16.msra.mxu0 %v1410
      %1637 = vmatprep.subr.bf16.mxu0 0
      %1638 = vmatpush2.bf16.msra.mxu0 %v1409
      %1639 = vmatprep.subr.bf16.mxu0 0
      %1640 = vmatpush2.bf16.msra.mxu0 %v1408
      %1641 = vmatprep.mubr.bf16.mxu0 %v1124
      %1642 = vmatmul.mubr.bf16.gmra.mxu0 %v1123
      %v1643 = vpop.f32.mrf.mxu0
      %v1644 = vadd.f32 %v1483, %v1643
      %v1645 = vpop.f32.mrf.mxu0
      %v1646 = vpop.f32.mrf.mxu0
      %v1647 = vadd.f32 %v1486, %v1646
      %v1648 = vpop.f32.mrf.mxu0
      %1649 = vmatprep.mubr.bf16.mxu0 %v1128
      %1650 = vmatmul.mubr.bf16.gmra.mxu0 %v1127
      %v1651 = vpop.f32.mrf.mxu0
      %v1652 = vadd.f32 %v1491, %v1651
      %v1653 = vpop.f32.mrf.mxu0
      %v1654 = vpop.f32.mrf.mxu0
      %v1655 = vadd.f32 %v1494, %v1654
      %v1656 = vpop.f32.mrf.mxu0
      %1657 = vmatprep.mubr.bf16.mxu0 %v1132
      %1658 = vmatmul.mubr.bf16.gmra.mxu0 %v1131
      %v1659 = vpop.f32.mrf.mxu0
      %v1660 = vadd.f32 %v1499, %v1659
      %v1661 = vpop.f32.mrf.mxu0
      %v1662 = vpop.f32.mrf.mxu0
      %v1663 = vadd.f32 %v1502, %v1662
      %v1664 = vpop.f32.mrf.mxu0
      %1665 = vmatprep.mubr.bf16.mxu0 %v1136
      %1666 = vmatmul.mubr.bf16.gmra.mxu0 %v1135
      %v1667 = vpop.f32.mrf.mxu0
      %v1668 = vadd.f32 %v1507, %v1667
      %v1669 = vpop.f32.mrf.mxu0
      %v1670 = vpop.f32.mrf.mxu0
      %v1671 = vadd.f32 %v1510, %v1670
      %v1672 = vpop.f32.mrf.mxu0
      %1673 = vmatprep.mubr.bf16.mxu0 %v1140
      %1674 = vmatmul.mubr.bf16.gmra.mxu0 %v1139
      %v1675 = vpop.f32.mrf.mxu0
      %v1676 = vadd.f32 %v1515, %v1675
      %v1677 = vpop.f32.mrf.mxu0
      %v1678 = vpop.f32.mrf.mxu0
      %v1679 = vadd.f32 %v1518, %v1678
      %v1680 = vpop.f32.mrf.mxu0
      %1681 = vmatprep.mubr.bf16.mxu0 %v1144
      %1682 = vmatmul.mubr.bf16.gmra.mxu0 %v1143
      %v1683 = vpop.f32.mrf.mxu0
      %v1684 = vadd.f32 %v1523, %v1683
      %v1685 = vpop.f32.mrf.mxu0
      %v1686 = vpop.f32.mrf.mxu0
      %v1687 = vadd.f32 %v1526, %v1686
      %v1688 = vpop.f32.mrf.mxu0
      %1689 = vmatprep.mubr.bf16.mxu0 %v1148
      %1690 = vmatmul.mubr.bf16.gmra.mxu0 %v1147
      %v1691 = vpop.f32.mrf.mxu0
      %v1692 = vadd.f32 %v1531, %v1691
      %v1693 = vpop.f32.mrf.mxu0
      %v1694 = vpop.f32.mrf.mxu0
      %v1695 = vadd.f32 %v1534, %v1694
      %v1696 = vpop.f32.mrf.mxu0
      %1697 = vmatprep.mubr.bf16.mxu0 %v1152
      %1698 = vmatmul.mubr.bf16.gmra.mxu0 %v1151
      %v1699 = vpop.f32.mrf.mxu0
      %v1700 = vadd.f32 %v1539, %v1699
      %v1701 = vpop.f32.mrf.mxu0
      %v1702 = vpop.f32.mrf.mxu0
      %v1703 = vadd.f32 %v1542, %v1702
      %v1704 = vpop.f32.mrf.mxu0
      %1705 = vmatprep.mubr.bf16.mxu0 %v1156
      %1706 = vmatmul.mubr.bf16.gmra.mxu0 %v1155
      %v1707 = vpop.f32.mrf.mxu0
      %v1708 = vadd.f32 %v1547, %v1707
      %v1709 = vpop.f32.mrf.mxu0
      %v1710 = vpop.f32.mrf.mxu0
      %v1711 = vadd.f32 %v1550, %v1710
      %v1712 = vpop.f32.mrf.mxu0
      %1713 = vmatprep.mubr.bf16.mxu0 %v1160
      %1714 = vmatmul.mubr.bf16.gmra.mxu0 %v1159
      %v1715 = vpop.f32.mrf.mxu0
      %v1716 = vadd.f32 %v1555, %v1715
      %v1717 = vpop.f32.mrf.mxu0
      %v1718 = vpop.f32.mrf.mxu0
      %v1719 = vadd.f32 %v1558, %v1718
      %v1720 = vpop.f32.mrf.mxu0
      %1721 = vmatprep.mubr.bf16.mxu0 %v1164
      %1722 = vmatmul.mubr.bf16.gmra.mxu0 %v1163
      %v1723 = vpop.f32.mrf.mxu0
      %v1724 = vadd.f32 %v1563, %v1723
      %v1725 = vpop.f32.mrf.mxu0
      %v1726 = vpop.f32.mrf.mxu0
      %v1727 = vadd.f32 %v1566, %v1726
      %v1728 = vpop.f32.mrf.mxu0
      %1729 = vmatprep.mubr.bf16.mxu0 %v1168
      %1730 = vmatmul.mubr.bf16.gmra.mxu0 %v1167
      %v1731 = vpop.f32.mrf.mxu0
      %v1732 = vadd.f32 %v1571, %v1731
      %v1733 = vpop.f32.mrf.mxu0
      %v1734 = vpop.f32.mrf.mxu0
      %v1735 = vadd.f32 %v1574, %v1734
      %v1736 = vpop.f32.mrf.mxu0
      %1737 = vmatprep.mubr.bf16.mxu0 %v1172
      %1738 = vmatmul.mubr.bf16.gmra.mxu0 %v1171
      %v1739 = vpop.f32.mrf.mxu0
      %v1740 = vadd.f32 %v1579, %v1739
      %v1741 = vpop.f32.mrf.mxu0
      %v1742 = vpop.f32.mrf.mxu0
      %v1743 = vadd.f32 %v1582, %v1742
      %v1744 = vpop.f32.mrf.mxu0
      %1745 = vmatprep.mubr.bf16.mxu0 %v1176
      %1746 = vmatmul.mubr.bf16.gmra.mxu0 %v1175
      %v1747 = vpop.f32.mrf.mxu0
      %v1748 = vadd.f32 %v1587, %v1747
      %v1749 = vpop.f32.mrf.mxu0
      %v1750 = vpop.f32.mrf.mxu0
      %v1751 = vadd.f32 %v1590, %v1750
      %v1752 = vpop.f32.mrf.mxu0
      %1753 = vmatprep.mubr.bf16.mxu0 %v1180
      %1754 = vmatmul.mubr.bf16.gmra.mxu0 %v1179
      %v1755 = vpop.f32.mrf.mxu0
      %v1756 = vadd.f32 %v1595, %v1755
      %v1757 = vpop.f32.mrf.mxu0
      %v1758 = vpop.f32.mrf.mxu0
      %v1759 = vadd.f32 %v1598, %v1758
      %v1760 = vpop.f32.mrf.mxu0
      %1761 = vmatprep.mubr.bf16.mxu0 %v1184
      %1762 = vmatmul.mubr.bf16.gmra.mxu0 %v1183
      %v1763 = vpop.f32.mrf.mxu0
      %v1764 = vadd.f32 %v1603, %v1763
      %v1765 = vpop.f32.mrf.mxu0
      %v1766 = vpop.f32.mrf.mxu0
      %v1767 = vadd.f32 %v1606, %v1766
      %v1768 = vpop.f32.mrf.mxu0
      %1769 = vdwg.mxu0
      %1770 = vst [vmem:[%s262] sm:$0xff] %v1644
      %1771 = vst [vmem:[%s262 + $0x8] sm:$0xff] %v1647
      %1772 = vst [vmem:[%s262 + $0x10] sm:$0xff] %v1652
      %1773 = vst [vmem:[%s262 + $0x18] sm:$0xff] %v1655
      %1774 = vst [vmem:[%s262 + $0x20] sm:$0xff] %v1660
      %1775 = vst [vmem:[%s262 + $0x28] sm:$0xff] %v1663
      %1776 = vst [vmem:[%s262 + $0x30] sm:$0xff] %v1668
      %1777 = vst [vmem:[%s262 + $0x38] sm:$0xff] %v1671
      %1778 = vst [vmem:[%s262 + $0x40] sm:$0xff] %v1676
      %1779 = vst [vmem:[%s262 + $0x48] sm:$0xff] %v1679
      %1780 = vst [vmem:[%s262 + $0x50] sm:$0xff] %v1684
      %1781 = vst [vmem:[%s262 + $0x58] sm:$0xff] %v1687
      %1782 = vst [vmem:[%s262 + $0x60] sm:$0xff] %v1692
      %1783 = vst [vmem:[%s262 + $0x68] sm:$0xff] %v1695
      %1784 = vst [vmem:[%s262 + $0x70] sm:$0xff] %v1700
      %1785 = vst [vmem:[%s262 + $0x78] sm:$0xff] %v1703
      %1786 = vst [vmem:[%s262 + $0x80] sm:$0xff] %v1708
      %1787 = vst [vmem:[%s262 + $0x88] sm:$0xff] %v1711
      %1788 = vst [vmem:[%s262 + $0x90] sm:$0xff] %v1716
      %1789 = vst [vmem:[%s262 + $0x98] sm:$0xff] %v1719
      %1790 = vst [vmem:[%s262 + $0xa0] sm:$0xff] %v1724
      %1791 = vst [vmem:[%s262 + $0xa8] sm:$0xff] %v1727
      %1792 = vst [vmem:[%s262 + $0xb0] sm:$0xff] %v1732
      %1793 = vst [vmem:[%s262 + $0xb8] sm:$0xff] %v1735
      %1794 = vst [vmem:[%s262 + $0xc0] sm:$0xff] %v1740
      %1795 = vst [vmem:[%s262 + $0xc8] sm:$0xff] %v1743
      %1796 = vst [vmem:[%s262 + $0xd0] sm:$0xff] %v1748
      %1797 = vst [vmem:[%s262 + $0xd8] sm:$0xff] %v1751
      %1798 = vst [vmem:[%s262 + $0xe0] sm:$0xff] %v1756
      %1799 = vst [vmem:[%s262 + $0xe8] sm:$0xff] %v1759
      %1800 = vst [vmem:[%s262 + $0xf0] sm:$0xff] %v1764
      %1801 = vst [vmem:[%s262 + $0xf8] sm:$0xff] %v1767
      %s1802 = smul.u32 32, %s21
      %p1803 = scmp.lt.s32.totalorder %s20, 1
      %s1804 = scalar_select %p1803, %s20, 1
      %p1805 = scmp.lt.s32.totalorder %s1802, 31
      %s1806 = scalar_select %p1805, %s1802, 31
      %s1807 = smul.addr %s1804, 32
      %s1808 = sadd.s32 %s1806, %s1807
      %s1809 = smul.addr %s1808, 8
      %s1810 = scalar_lea.vmem %s5, %s1809
      // Predicated region
      $region41: #{rpn_forward.1} parent=39 // pred_check
        %p1811 = pneg %p160
      $region42: #{rpn_forward.1} parent=39 // pred_check_branch
        %1813 = sbr.rel (%p1811) target = $region44
      $region43: #{rpn_forward.1} parent=39 // pred_region
        %s1814 = smul.u32 32, %s21
      $region44: #{rpn_forward.1} parent=39 // pred_fallthru
        _
    $region40: #{rpn_forward.1} parent=5 // pred_fallthru
      _
    %p1815 = scmp.le.s32.totalorder 2, %s11
    // Predicated region
    $region45: #{rpn_forward.1} parent=5 // pred_check
      %p1816 = pneg %p1815
    $region46: #{rpn_forward.1} parent=5 // pred_check_branch
      %1818 = sbr.rel (%p1816) target = $region48
    $region47: #{rpn_forward.1} parent=5 // pred_region
      %s1819 = ssub.s32 %s11, 2
      // Predicated region
      $region49: #{rpn_forward.1} parent=47 // pred_check
        %p1820 = pneg %p166
      $region50: #{rpn_forward.1} parent=47 // pred_check_branch
        %1822 = sbr.rel (%p1820) target = $region52
      $region51: #{rpn_forward.1} parent=47 // pred_region
        %s1823 = smul.u32 32, %s23
        %p1824 = scmp.lt.s32.totalorder %s22, 1
        %s1825 = scalar_select %p1824, %s22, 1
        %p1826 = scmp.lt.s32.totalorder %s1823, 31
        %s1827 = scalar_select %p1826, %s1823, 31
        %s1828 = smul.addr %s1825, 32
        %s1829 = sadd.s32 %s1827, %s1828
        %s1830 = smul.addr %s1829, 8
        %s1831 = scalar_lea.vmem %s5, %s1830
      $region52: #{rpn_forward.1} parent=47 // pred_fallthru
        _
    $region48: #{rpn_forward.1} parent=5 // pred_fallthru
      _
  $region6: #{rpn_forward.1} parent=0 // loop_footer
    %s15 = sadd.s32 1, %s11
  $region7: #{rpn_forward.1} parent=0 // loop_footer_branch
    %10 = sbr.rel target = $region3
  $region8: #{rpn_forward.1} parent=0 // loop_exit
    _

</llo_original>
